<compile_context>
chip_gen: v5e
topology: v5e:2x2
jax: 0.10.0
libtpu: 0.0.40
codegen_flags: <defaults>
</compile_context>

<pallas_src>
import functools

import jax
import jax.numpy as jnp
from jax.experimental import pallas as pl
from jax.experimental.pallas import tpu as pltpu

# nn.LocalResponseNorm(5) defaults
LRN_SIZE = 5
LRN_ALPHA = 1e-4
LRN_BETA = 0.75
LRN_K = 1.0


def _choose_row_tile(total_rows, gemm_rows_of, batch):
    """Largest divisor of total_rows whose GEMM-row count fits the budget, preferring
    enough grid steps (>=4 overall) to keep both v7x TensorCores busy."""
    divs = [d for d in range(1, total_rows + 1) if total_rows % d == 0]
    fit = [d for d in divs if gemm_rows_of(d) <= 2048] or [1]
    pref = [d for d in fit if batch * (total_rows // d) >= 4]
    return max(pref) if pref else max(fit)


def _conv_lrn_relu_pool_kernel(x_ref, w_ref, b_ref, o_ref, *, cin, k_h, k_w,
                               tile_oh, ow, oc_pad, do_pool, p_size, p_stride,
                               tile_ph, pw_out):
    """Fused direct conv (in-kernel im2col) + bias + LRN(5) + ReLU [+ MaxPool].

    x_ref: (1, tile_oh + k_h - 1, ow + k_w - 1, cin)  padded-input row band
    w_ref: (k_h * k_w * cin, oc_pad)                  reshaped, zero-padded weights
    b_ref: (1, oc_pad)                                zero-padded bias
    o_ref: (1, tile_ph, pw_out, oc_pad) if do_pool else (1, tile_oh, ow, oc_pad)
    """
    band_h = tile_oh + k_h - 1
    w_band = ow + k_w - 1
    band = x_ref[...].reshape(band_h, w_band, cin)
    tm = tile_oh * ow

    # Direct convolution: one (tm, cin) x (cin, oc_pad) MXU GEMM per filter tap,
    # accumulated in f32.  No im2col buffer ever touches HBM.
    acc = jnp.zeros((tm, oc_pad), dtype=jnp.float32)
    for i in range(k_h):
        for j in range(k_w):
            patch = band[i:i + tile_oh, j:j + ow, :]            # (tile_oh, ow, cin)
            lhs = patch.reshape(tm, cin)
            tap = i * k_w + j
            rhs = w_ref[tap * cin:(tap + 1) * cin, :]           # (cin, oc_pad)
            acc = acc + jnp.dot(lhs, rhs, preferred_element_type=jnp.float32)

    y = acc + b_ref[...]                                        # (tm, oc_pad)

    # LRN(5): zero-padded window sum over channels via lane shifts.  The padded
    # channels (>= 2 of them) carry exactly zero (zero weights/bias), so the
    # circular wrap of jnp.roll contributes nothing to real channels.
    sq = y * y
    ssum = sq
    for d in (1, 2):
        ssum = ssum + jnp.roll(sq, d, axis=-1) + jnp.roll(sq, -d, axis=-1)
    base = LRN_K + (LRN_ALPHA / LRN_SIZE) * ssum
    rsq = jax.lax.rsqrt(base)                 # base^-1/2
    y = y * (rsq * jnp.sqrt(rsq))             # * base^-1/4  => overall base^-0.75
    y = jnp.maximum(y, 0.0)                   # ReLU

    if not do_pool:
        o_ref[...] = y.reshape(1, tile_oh, ow, oc_pad).astype(o_ref.dtype)
        return

    # MaxPool2d(p_size, p_stride), floor mode, using static slices only:
    # sliding-window max, then row/column subsampling.
    y3 = y.reshape(tile_oh, ow, oc_pad)
    rh = tile_oh - p_size + 1
    rw = ow - p_size + 1
    sm = y3[:rh, :rw, :]                      # init from the (0, 0) window read
    for di in range(p_size):
        for dj in range(p_size):
            if di == 0 and dj == 0:
                continue
            sm = jnp.maximum(sm, y3[di:di + rh, dj:dj + rw, :])
    rows = jnp.stack([sm[rp * p_stride] for rp in range(tile_ph)], axis=0)          # (tile_ph, rw, oc_pad)
    pooled = jnp.stack([rows[:, q * p_stride, :] for q in range(pw_out)], axis=1)   # (tile_ph, pw_out, oc_pad)
    o_ref[...] = pooled[None].astype(o_ref.dtype)


class Conv2dPallas:
    """Pallas equivalent of the PyTorch Conv2d module (conv+LRN+ReLU+optional pool)."""

    def __init__(self, in_channels, out_channels, kernel_size,
                 p_size, p_stride, padding, do_pool, *, key):
        self.in_channels = in_channels
        self.out_channels = out_channels
        self.kernel_size = int(kernel_size)
        self.p_size = int(p_size)
        self.p_stride = int(p_stride)
        self.padding = int(padding)
        self.do_pool = bool(do_pool)

        # Deterministic init mimicking nn.Conv2d default (uniform +-1/sqrt(fan_in)).
        fan_in = in_channels * self.kernel_size * self.kernel_size
        bound = 1.0 / (fan_in ** 0.5)
        k_w, k_b = jax.random.split(key)
        self.weight = jax.random.uniform(
            k_w, (out_channels, in_channels, self.kernel_size, self.kernel_size),
            jnp.float32, -bound, bound)          # OIHW, like PyTorch
        self.bias = jax.random.uniform(k_b, (out_channels,), jnp.float32, -bound, bound)

    def __call__(self, x):
        # x: NCHW
        n, cin, h, w = x.shape
        k_h = k_w = self.kernel_size
        pad = self.padding
        oh = h + 2 * pad - k_h + 1
        ow = w + 2 * pad - k_w + 1
        oc = self.out_channels

        # Lane-dense output channels; keep >= 2 zero channels so the roll-based LRN
        # window is exact.
        oc_pad = ((oc + 127) // 128) * 128
        if oc_pad - oc < 2:
            oc_pad += 128

        # ---- layout glue: NCHW -> NHWC, spatial padding ----
        x_nhwc = jnp.transpose(x, (0, 2, 3, 1)).astype(jnp.float32)
        xp = jnp.pad(x_nhwc, ((0, 0), (pad, pad), (pad, pad), (0, 0)))
        wp_ = w + 2 * pad

        # weight OIHW -> (KH, KW, Cin, OC) -> (KH*KW*Cin, OC_pad); bias -> (1, OC_pad)
        w2 = jnp.transpose(self.weight, (2, 3, 1, 0)).reshape(k_h * k_w * cin, oc)
        w2 = jnp.pad(w2, ((0, 0), (0, oc_pad - oc)))
        b2 = jnp.pad(self.bias, (0, oc_pad - oc)).reshape(1, oc_pad)

        # ---- row tiling (over pooled rows when pooling so pool windows stay whole) ----
        if self.do_pool:
            p_size, p_stride = self.p_size, self.p_stride
            ph = (oh - p_size) // p_stride + 1
            pw_out = (ow - p_size) // p_stride + 1
            tile_ph = _choose_row_tile(ph, lambda d: ((d - 1) * p_stride + p_size) * ow, n)
            n_tiles = ph // tile_ph
            tile_oh = (tile_ph - 1) * p_stride + p_size
            starts = [t * tile_ph * p_stride for t in range(n_tiles)]
            out_rows, out_cols = ph, pw_out
            out_block = (1, tile_ph, pw_out, oc_pad)
        else:
            p_size = p_stride = 1
            tile_ph = pw_out = 0
            tile_oh = _choose_row_tile(oh, lambda d: d * ow, n)
            n_tiles = oh // tile_oh
            starts = [t * tile_oh for t in range(n_tiles)]
            out_rows, out_cols = oh, ow
            out_block = (1, tile_oh, ow, oc_pad)

        band_h = tile_oh + k_h - 1
        # Halo'd input row bands (tiny duplication of (k_h-1) rows per tile) so each
        # grid step is independent and BlockSpec needs no overlapping windows.
        bands = jnp.stack([xp[:, s:s + band_h] for s in starts], axis=1)
        x_bands = bands.reshape(n * n_tiles, band_h, wp_, cin)

        kern = functools.partial(
            _conv_lrn_relu_pool_kernel,
            cin=cin, k_h=k_h, k_w=k_w, tile_oh=tile_oh, ow=ow, oc_pad=oc_pad,
            do_pool=self.do_pool, p_size=p_size, p_stride=p_stride,
            tile_ph=tile_ph, pw_out=pw_out)

        out = pl.pallas_call(
            kern,
            out_shape=jax.ShapeDtypeStruct((n, out_rows, out_cols, oc_pad), jnp.float32),
            grid=(n, n_tiles),
            in_specs=[
                pl.BlockSpec((1, band_h, wp_, cin),
                             lambda nb, t: (nb * n_tiles + t, 0, 0, 0)),
                pl.BlockSpec((k_h * k_w * cin, oc_pad), lambda nb, t: (0, 0)),
                pl.BlockSpec((1, oc_pad), lambda nb, t: (0, 0)),
            ],
            out_specs=pl.BlockSpec(out_block, lambda nb, t: (nb, t, 0, 0)),
            compiler_params=pltpu.CompilerParams(
                dimension_semantics=("parallel", "parallel"),
                vmem_limit_bytes=48 * 1024 * 1024),
        )(x_bands, w2, b2)

        out = out[:, :, :, :oc]                       # drop lane padding
        return jnp.transpose(out, (0, 3, 1, 2))       # back to NCHW


def _reference(x, w, b, padding, p_size, p_stride, do_pool):
    """Pure-JAX reference matching PyTorch semantics (NCHW)."""
    y = jax.lax.conv_general_dilated(
        x, w, window_strides=(1, 1), padding=[(padding, padding)] * 2,
        dimension_numbers=("NCHW", "OIHW", "NCHW")) + b[None, :, None, None]
    c = y.shape[1]
    sq = y * y
    padded = jnp.pad(sq, ((0, 0), (LRN_SIZE // 2, (LRN_SIZE - 1) // 2), (0, 0), (0, 0)))
    ssum = sum(padded[:, i:i + c] for i in range(LRN_SIZE))
    y = y / (LRN_K + (LRN_ALPHA / LRN_SIZE) * ssum) ** LRN_BETA
    y = jnp.maximum(y, 0.0)
    if do_pool:
        y = jax.lax.reduce_window(y, -jnp.inf, jax.lax.max,
                                  (1, 1, p_size, p_size),
                                  (1, 1, p_stride, p_stride), "VALID")
    return y


if __name__ == "__main__":
    key = jax.random.PRNGKey(0)
    k1, k2, kx = jax.random.split(key, 3)

    x = jax.random.normal(kx, (2, 4, 16, 16), dtype=jnp.float32)   # NCHW

    # Config 1: conv(3x3, pad=1) -> LRN(5) -> ReLU -> MaxPool(2, 2)
    mod1 = Conv2dPallas(in_channels=4, out_channels=8, kernel_size=3,
                        p_size=2, p_stride=2, padding=1, do_pool=True, key=k1)
    out1 = jax.block_until_ready(mod1(x))
    ref1 = _reference(x, mod1.weight, mod1.bias, 1, 2, 2, True)
    assert out1.shape == ref1.shape, (out1.shape, ref1.shape)
    assert jnp.allclose(out1, ref1, atol=1e-2, rtol=1e-2), \
        float(jnp.max(jnp.abs(out1 - ref1)))

    # Config 2: same conv but without pooling (exercises the non-pool branch)
    mod2 = Conv2dPallas(in_channels=4, out_channels=8, kernel_size=3,
                        p_size=2, p_stride=2, padding=1, do_pool=False, key=k2)
    out2 = jax.block_until_ready(mod2(x))
    ref2 = _reference(x, mod2.weight, mod2.bias, 1, 2, 2, False)
    assert out2.shape == ref2.shape, (out2.shape, ref2.shape)
    assert jnp.allclose(out2, ref2, atol=1e-2, rtol=1e-2), \
        float(jnp.max(jnp.abs(out2 - ref2)))

    print("KERNEL_OK")
</pallas_src>

<mosaic_0001>
module attributes {stable_mosaic.version = 11 : i64} {
  func.func @_conv_lrn_relu_pool_kernel(%arg0: i32, %arg1: i32, %arg2: memref<1x10x18x4xf32, #tpu.memory_space<vmem>>, %arg3: memref<36x128xf32, #tpu.memory_space<vmem>>, %arg4: memref<1x128xf32, #tpu.memory_space<vmem>>, %arg5: memref<1x4x8x128xf32, #tpu.memory_space<vmem>>) attributes {dimension_semantics = [#tpu.dimension_semantics<parallel>, #tpu.dimension_semantics<parallel>], iteration_bounds = array<i64: 2, 2>, scalar_prefetch = 0 : i64, scratch_operands = 0 : i64, tpu.core_type = #tpu.core_type<tc>, window_params = [{transform_indices = @transform_0, window_bounds = array<i64: 1, 10, 18, 4>}, {pipeline_mode = #tpu.pipeline_mode<synchronous>, transform_indices = @transform_1, window_bounds = array<i64: 36, 128>}, {pipeline_mode = #tpu.pipeline_mode<synchronous>, transform_indices = @transform_2, window_bounds = array<i64: 1, 128>}, {transform_indices = @transform_3, window_bounds = array<i64: 1, 4, 8, 128>}]} {
    %c0 = arith.constant 0 : index
    %c0_0 = arith.constant 0 : index
    %c0_1 = arith.constant 0 : index
    %c0_2 = arith.constant 0 : index
    %0 = vector.load %arg2[%c0, %c0_0, %c0_1, %c0_2] : memref<1x10x18x4xf32, #tpu.memory_space<vmem>>, vector<1x10x18x4xf32>
    %1 = vector.shape_cast %0 : vector<1x10x18x4xf32> to vector<10x18x4xf32>
    %cst = arith.constant 0.000000e+00 : f32
    %2 = vector.broadcast %cst : f32 to vector<128x128xf32>
    %3 = vector.extract_strided_slice %1 {offsets = [0, 0, 0], sizes = [8, 16, 4], strides = [1, 1, 1]} : vector<10x18x4xf32> to vector<8x16x4xf32>
    %4 = vector.shape_cast %3 : vector<8x16x4xf32> to vector<128x4xf32>
    %c0_3 = arith.constant 0 : index
    %c0_4 = arith.constant 0 : index
    %5 = vector.load %arg3[%c0_3, %c0_4] : memref<36x128xf32, #tpu.memory_space<vmem>>, vector<4x128xf32>
    %cst_5 = arith.constant dense<0.000000e+00> : vector<128x128xf32>
    %6 = tpu.matmul %4, %5, %cst_5 {dimension_numbers = #tpu.dot_dimension_numbers<[1], [0], [0], [1], [0, 0, 1, 1], [], []>} : vector<128x4xf32>, vector<4x128xf32>, vector<128x128xf32> -> vector<128x128xf32>
    %7 = arith.addf %2, %6 : vector<128x128xf32>
    %8 = vector.extract_strided_slice %1 {offsets = [0, 1, 0], sizes = [8, 16, 4], strides = [1, 1, 1]} : vector<10x18x4xf32> to vector<8x16x4xf32>
    %9 = vector.shape_cast %8 : vector<8x16x4xf32> to vector<128x4xf32>
    %c4 = arith.constant 4 : index
    %c0_6 = arith.constant 0 : index
    %10 = vector.load %arg3[%c4, %c0_6] : memref<36x128xf32, #tpu.memory_space<vmem>>, vector<4x128xf32>
    %cst_7 = arith.constant dense<0.000000e+00> : vector<128x128xf32>
    %11 = tpu.matmul %9, %10, %cst_7 {dimension_numbers = #tpu.dot_dimension_numbers<[1], [0], [0], [1], [0, 0, 1, 1], [], []>} : vector<128x4xf32>, vector<4x128xf32>, vector<128x128xf32> -> vector<128x128xf32>
    %12 = arith.addf %7, %11 : vector<128x128xf32>
    %13 = vector.extract_strided_slice %1 {offsets = [0, 2, 0], sizes = [8, 16, 4], strides = [1, 1, 1]} : vector<10x18x4xf32> to vector<8x16x4xf32>
    %14 = vector.shape_cast %13 : vector<8x16x4xf32> to vector<128x4xf32>
    %c8 = arith.constant 8 : index
    %c0_8 = arith.constant 0 : index
    %15 = vector.load %arg3[%c8, %c0_8] : memref<36x128xf32, #tpu.memory_space<vmem>>, vector<4x128xf32>
    %cst_9 = arith.constant dense<0.000000e+00> : vector<128x128xf32>
    %16 = tpu.matmul %14, %15, %cst_9 {dimension_numbers = #tpu.dot_dimension_numbers<[1], [0], [0], [1], [0, 0, 1, 1], [], []>} : vector<128x4xf32>, vector<4x128xf32>, vector<128x128xf32> -> vector<128x128xf32>
    %17 = arith.addf %12, %16 : vector<128x128xf32>
    %18 = vector.extract_strided_slice %1 {offsets = [1, 0, 0], sizes = [8, 16, 4], strides = [1, 1, 1]} : vector<10x18x4xf32> to vector<8x16x4xf32>
    %19 = vector.shape_cast %18 : vector<8x16x4xf32> to vector<128x4xf32>
    %c12 = arith.constant 12 : index
    %c0_10 = arith.constant 0 : index
    %20 = vector.load %arg3[%c12, %c0_10] : memref<36x128xf32, #tpu.memory_space<vmem>>, vector<4x128xf32>
    %cst_11 = arith.constant dense<0.000000e+00> : vector<128x128xf32>
    %21 = tpu.matmul %19, %20, %cst_11 {dimension_numbers = #tpu.dot_dimension_numbers<[1], [0], [0], [1], [0, 0, 1, 1], [], []>} : vector<128x4xf32>, vector<4x128xf32>, vector<128x128xf32> -> vector<128x128xf32>
    %22 = arith.addf %17, %21 : vector<128x128xf32>
    %23 = vector.extract_strided_slice %1 {offsets = [1, 1, 0], sizes = [8, 16, 4], strides = [1, 1, 1]} : vector<10x18x4xf32> to vector<8x16x4xf32>
    %24 = vector.shape_cast %23 : vector<8x16x4xf32> to vector<128x4xf32>
    %c16 = arith.constant 16 : index
    %c0_12 = arith.constant 0 : index
    %25 = vector.load %arg3[%c16, %c0_12] : memref<36x128xf32, #tpu.memory_space<vmem>>, vector<4x128xf32>
    %cst_13 = arith.constant dense<0.000000e+00> : vector<128x128xf32>
    %26 = tpu.matmul %24, %25, %cst_13 {dimension_numbers = #tpu.dot_dimension_numbers<[1], [0], [0], [1], [0, 0, 1, 1], [], []>} : vector<128x4xf32>, vector<4x128xf32>, vector<128x128xf32> -> vector<128x128xf32>
    %27 = arith.addf %22, %26 : vector<128x128xf32>
    %28 = vector.extract_strided_slice %1 {offsets = [1, 2, 0], sizes = [8, 16, 4], strides = [1, 1, 1]} : vector<10x18x4xf32> to vector<8x16x4xf32>
    %29 = vector.shape_cast %28 : vector<8x16x4xf32> to vector<128x4xf32>
    %c20 = arith.constant 20 : index
    %c0_14 = arith.constant 0 : index
    %30 = vector.load %arg3[%c20, %c0_14] : memref<36x128xf32, #tpu.memory_space<vmem>>, vector<4x128xf32>
    %cst_15 = arith.constant dense<0.000000e+00> : vector<128x128xf32>
    %31 = tpu.matmul %29, %30, %cst_15 {dimension_numbers = #tpu.dot_dimension_numbers<[1], [0], [0], [1], [0, 0, 1, 1], [], []>} : vector<128x4xf32>, vector<4x128xf32>, vector<128x128xf32> -> vector<128x128xf32>
    %32 = arith.addf %27, %31 : vector<128x128xf32>
    %33 = vector.extract_strided_slice %1 {offsets = [2, 0, 0], sizes = [8, 16, 4], strides = [1, 1, 1]} : vector<10x18x4xf32> to vector<8x16x4xf32>
    %34 = vector.shape_cast %33 : vector<8x16x4xf32> to vector<128x4xf32>
    %c24 = arith.constant 24 : index
    %c0_16 = arith.constant 0 : index
    %35 = vector.load %arg3[%c24, %c0_16] : memref<36x128xf32, #tpu.memory_space<vmem>>, vector<4x128xf32>
    %cst_17 = arith.constant dense<0.000000e+00> : vector<128x128xf32>
    %36 = tpu.matmul %34, %35, %cst_17 {dimension_numbers = #tpu.dot_dimension_numbers<[1], [0], [0], [1], [0, 0, 1, 1], [], []>} : vector<128x4xf32>, vector<4x128xf32>, vector<128x128xf32> -> vector<128x128xf32>
    %37 = arith.addf %32, %36 : vector<128x128xf32>
    %38 = vector.extract_strided_slice %1 {offsets = [2, 1, 0], sizes = [8, 16, 4], strides = [1, 1, 1]} : vector<10x18x4xf32> to vector<8x16x4xf32>
    %39 = vector.shape_cast %38 : vector<8x16x4xf32> to vector<128x4xf32>
    %c28 = arith.constant 28 : index
    %c0_18 = arith.constant 0 : index
    %40 = vector.load %arg3[%c28, %c0_18] : memref<36x128xf32, #tpu.memory_space<vmem>>, vector<4x128xf32>
    %cst_19 = arith.constant dense<0.000000e+00> : vector<128x128xf32>
    %41 = tpu.matmul %39, %40, %cst_19 {dimension_numbers = #tpu.dot_dimension_numbers<[1], [0], [0], [1], [0, 0, 1, 1], [], []>} : vector<128x4xf32>, vector<4x128xf32>, vector<128x128xf32> -> vector<128x128xf32>
    %42 = arith.addf %37, %41 : vector<128x128xf32>
    %43 = vector.extract_strided_slice %1 {offsets = [2, 2, 0], sizes = [8, 16, 4], strides = [1, 1, 1]} : vector<10x18x4xf32> to vector<8x16x4xf32>
    %44 = vector.shape_cast %43 : vector<8x16x4xf32> to vector<128x4xf32>
    %c32 = arith.constant 32 : index
    %c0_20 = arith.constant 0 : index
    %45 = vector.load %arg3[%c32, %c0_20] : memref<36x128xf32, #tpu.memory_space<vmem>>, vector<4x128xf32>
    %cst_21 = arith.constant dense<0.000000e+00> : vector<128x128xf32>
    %46 = tpu.matmul %44, %45, %cst_21 {dimension_numbers = #tpu.dot_dimension_numbers<[1], [0], [0], [1], [0, 0, 1, 1], [], []>} : vector<128x4xf32>, vector<4x128xf32>, vector<128x128xf32> -> vector<128x128xf32>
    %47 = arith.addf %42, %46 : vector<128x128xf32>
    %c0_22 = arith.constant 0 : index
    %c0_23 = arith.constant 0 : index
    %48 = vector.load %arg4[%c0_22, %c0_23] : memref<1x128xf32, #tpu.memory_space<vmem>>, vector<1x128xf32>
    %49 = vector.broadcast %48 : vector<1x128xf32> to vector<128x128xf32>
    %50 = arith.addf %47, %49 : vector<128x128xf32>
    %51 = arith.mulf %50, %50 : vector<128x128xf32>
    %52 = vector.extract_strided_slice %51 {offsets = [0, 127], sizes = [128, 1], strides = [1, 1]} : vector<128x128xf32> to vector<128x1xf32>
    %53 = vector.extract_strided_slice %51 {offsets = [0, 0], sizes = [128, 127], strides = [1, 1]} : vector<128x128xf32> to vector<128x127xf32>
    %54 = tpu.concatenate %52, %53 in 1 : vector<128x1xf32>, vector<128x127xf32> -> vector<128x128xf32>
    %55 = arith.addf %51, %54 : vector<128x128xf32>
    %56 = vector.extract_strided_slice %51 {offsets = [0, 1], sizes = [128, 127], strides = [1, 1]} : vector<128x128xf32> to vector<128x127xf32>
    %57 = vector.extract_strided_slice %51 {offsets = [0, 0], sizes = [128, 1], strides = [1, 1]} : vector<128x128xf32> to vector<128x1xf32>
    %58 = tpu.concatenate %56, %57 in 1 : vector<128x127xf32>, vector<128x1xf32> -> vector<128x128xf32>
    %59 = arith.addf %55, %58 : vector<128x128xf32>
    %60 = vector.extract_strided_slice %51 {offsets = [0, 126], sizes = [128, 2], strides = [1, 1]} : vector<128x128xf32> to vector<128x2xf32>
    %61 = vector.extract_strided_slice %51 {offsets = [0, 0], sizes = [128, 126], strides = [1, 1]} : vector<128x128xf32> to vector<128x126xf32>
    %62 = tpu.concatenate %60, %61 in 1 : vector<128x2xf32>, vector<128x126xf32> -> vector<128x128xf32>
    %63 = arith.addf %59, %62 : vector<128x128xf32>
    %64 = vector.extract_strided_slice %51 {offsets = [0, 2], sizes = [128, 126], strides = [1, 1]} : vector<128x128xf32> to vector<128x126xf32>
    %65 = vector.extract_strided_slice %51 {offsets = [0, 0], sizes = [128, 2], strides = [1, 1]} : vector<128x128xf32> to vector<128x2xf32>
    %66 = tpu.concatenate %64, %65 in 1 : vector<128x126xf32>, vector<128x2xf32> -> vector<128x128xf32>
    %67 = arith.addf %63, %66 : vector<128x128xf32>
    %cst_24 = arith.constant 2.000000e-05 : f32
    %68 = vector.broadcast %cst_24 : f32 to vector<128x128xf32>
    %69 = arith.mulf %68, %67 : vector<128x128xf32>
    %cst_25 = arith.constant 1.000000e+00 : f32
    %70 = vector.broadcast %cst_25 : f32 to vector<128x128xf32>
    %71 = arith.addf %70, %69 : vector<128x128xf32>
    %72 = math.rsqrt %71 : vector<128x128xf32>
    %73 = math.sqrt %72 : vector<128x128xf32>
    %74 = arith.mulf %72, %73 : vector<128x128xf32>
    %75 = arith.mulf %50, %74 : vector<128x128xf32>
    %cst_26 = arith.constant 0.000000e+00 : f32
    %76 = vector.broadcast %cst_26 : f32 to vector<128x128xf32>
    %77 = arith.maximumf %75, %76 : vector<128x128xf32>
    %78 = vector.shape_cast %77 : vector<128x128xf32> to vector<8x16x128xf32>
    %79 = vector.extract_strided_slice %78 {offsets = [0, 0, 0], sizes = [7, 15, 128], strides = [1, 1, 1]} : vector<8x16x128xf32> to vector<7x15x128xf32>
    %80 = vector.extract_strided_slice %78 {offsets = [0, 1, 0], sizes = [7, 15, 128], strides = [1, 1, 1]} : vector<8x16x128xf32> to vector<7x15x128xf32>
    %81 = arith.maximumf %79, %80 : vector<7x15x128xf32>
    %82 = vector.extract_strided_slice %78 {offsets = [1, 0, 0], sizes = [7, 15, 128], strides = [1, 1, 1]} : vector<8x16x128xf32> to vector<7x15x128xf32>
    %83 = arith.maximumf %81, %82 : vector<7x15x128xf32>
    %84 = vector.extract_strided_slice %78 {offsets = [1, 1, 0], sizes = [7, 15, 128], strides = [1, 1, 1]} : vector<8x16x128xf32> to vector<7x15x128xf32>
    %85 = arith.maximumf %83, %84 : vector<7x15x128xf32>
    %86 = vector.extract_strided_slice %85 {offsets = [0, 0, 0], sizes = [1, 15, 128], strides = [1, 1, 1]} : vector<7x15x128xf32> to vector<1x15x128xf32>
    %87 = vector.shape_cast %86 : vector<1x15x128xf32> to vector<15x128xf32>
    %88 = vector.extract_strided_slice %85 {offsets = [2, 0, 0], sizes = [1, 15, 128], strides = [1, 1, 1]} : vector<7x15x128xf32> to vector<1x15x128xf32>
    %89 = vector.shape_cast %88 : vector<1x15x128xf32> to vector<15x128xf32>
    %90 = vector.extract_strided_slice %85 {offsets = [4, 0, 0], sizes = [1, 15, 128], strides = [1, 1, 1]} : vector<7x15x128xf32> to vector<1x15x128xf32>
    %91 = vector.shape_cast %90 : vector<1x15x128xf32> to vector<15x128xf32>
    %92 = vector.extract_strided_slice %85 {offsets = [6, 0, 0], sizes = [1, 15, 128], strides = [1, 1, 1]} : vector<7x15x128xf32> to vector<1x15x128xf32>
    %93 = vector.shape_cast %92 : vector<1x15x128xf32> to vector<15x128xf32>
    %94 = vector.shape_cast %87 : vector<15x128xf32> to vector<1x15x128xf32>
    %95 = vector.shape_cast %89 : vector<15x128xf32> to vector<1x15x128xf32>
    %96 = vector.shape_cast %91 : vector<15x128xf32> to vector<1x15x128xf32>
    %97 = vector.shape_cast %93 : vector<15x128xf32> to vector<1x15x128xf32>
    %98 = tpu.concatenate %94, %95, %96, %97 in 0 : vector<1x15x128xf32>, vector<1x15x128xf32>, vector<1x15x128xf32>, vector<1x15x128xf32> -> vector<4x15x128xf32>
    %99 = vector.extract_strided_slice %98 {offsets = [0, 0, 0], sizes = [4, 1, 128], strides = [1, 1, 1]} : vector<4x15x128xf32> to vector<4x1x128xf32>
    %100 = vector.shape_cast %99 : vector<4x1x128xf32> to vector<4x128xf32>
    %101 = vector.extract_strided_slice %98 {offsets = [0, 2, 0], sizes = [4, 1, 128], strides = [1, 1, 1]} : vector<4x15x128xf32> to vector<4x1x128xf32>
    %102 = vector.shape_cast %101 : vector<4x1x128xf32> to vector<4x128xf32>
    %103 = vector.extract_strided_slice %98 {offsets = [0, 4, 0], sizes = [4, 1, 128], strides = [1, 1, 1]} : vector<4x15x128xf32> to vector<4x1x128xf32>
    %104 = vector.shape_cast %103 : vector<4x1x128xf32> to vector<4x128xf32>
    %105 = vector.extract_strided_slice %98 {offsets = [0, 6, 0], sizes = [4, 1, 128], strides = [1, 1, 1]} : vector<4x15x128xf32> to vector<4x1x128xf32>
    %106 = vector.shape_cast %105 : vector<4x1x128xf32> to vector<4x128xf32>
    %107 = vector.extract_strided_slice %98 {offsets = [0, 8, 0], sizes = [4, 1, 128], strides = [1, 1, 1]} : vector<4x15x128xf32> to vector<4x1x128xf32>
    %108 = vector.shape_cast %107 : vector<4x1x128xf32> to vector<4x128xf32>
    %109 = vector.extract_strided_slice %98 {offsets = [0, 10, 0], sizes = [4, 1, 128], strides = [1, 1, 1]} : vector<4x15x128xf32> to vector<4x1x128xf32>
    %110 = vector.shape_cast %109 : vector<4x1x128xf32> to vector<4x128xf32>
    %111 = vector.extract_strided_slice %98 {offsets = [0, 12, 0], sizes = [4, 1, 128], strides = [1, 1, 1]} : vector<4x15x128xf32> to vector<4x1x128xf32>
    %112 = vector.shape_cast %111 : vector<4x1x128xf32> to vector<4x128xf32>
    %113 = vector.extract_strided_slice %98 {offsets = [0, 14, 0], sizes = [4, 1, 128], strides = [1, 1, 1]} : vector<4x15x128xf32> to vector<4x1x128xf32>
    %114 = vector.shape_cast %113 : vector<4x1x128xf32> to vector<4x128xf32>
    %115 = vector.shape_cast %100 : vector<4x128xf32> to vector<4x1x128xf32>
    %116 = vector.shape_cast %102 : vector<4x128xf32> to vector<4x1x128xf32>
    %117 = vector.shape_cast %104 : vector<4x128xf32> to vector<4x1x128xf32>
    %118 = vector.shape_cast %106 : vector<4x128xf32> to vector<4x1x128xf32>
    %119 = vector.shape_cast %108 : vector<4x128xf32> to vector<4x1x128xf32>
    %120 = vector.shape_cast %110 : vector<4x128xf32> to vector<4x1x128xf32>
    %121 = vector.shape_cast %112 : vector<4x128xf32> to vector<4x1x128xf32>
    %122 = vector.shape_cast %114 : vector<4x128xf32> to vector<4x1x128xf32>
    %123 = tpu.concatenate %115, %116, %117, %118, %119, %120, %121, %122 in 1 : vector<4x1x128xf32>, vector<4x1x128xf32>, vector<4x1x128xf32>, vector<4x1x128xf32>, vector<4x1x128xf32>, vector<4x1x128xf32>, vector<4x1x128xf32>, vector<4x1x128xf32> -> vector<4x8x128xf32>
    %124 = vector.shape_cast %123 : vector<4x8x128xf32> to vector<1x4x8x128xf32>
    %c0_27 = arith.constant 0 : index
    %c0_28 = arith.constant 0 : index
    %c0_29 = arith.constant 0 : index
    %c0_30 = arith.constant 0 : index
    %125 = vector.load %arg5[%c0_27, %c0_28, %c0_29, %c0_30] : memref<1x4x8x128xf32, #tpu.memory_space<vmem>>, vector<1x4x8x128xf32>
    tpu.vector_store %arg5[%c0_27, %c0_28, %c0_29, %c0_30], %124 {strides = array<i32>} : memref<1x4x8x128xf32, #tpu.memory_space<vmem>>, vector<1x4x8x128xf32>,
    return
  }
  func.func @transform_0(%arg0: i32, %arg1: i32) -> (i32, i32, i32, i32) {
    %c2_i32 = arith.constant 2 : i32
    %0 = arith.muli %arg0, %c2_i32 : i32
    %1 = arith.addi %0, %arg1 : i32
    %c0_i32 = arith.constant 0 : i32
    %c0_i32_0 = arith.constant 0 : i32
    %c0_i32_1 = arith.constant 0 : i32
    %c0_i32_2 = arith.constant 0 : i32
    return %1, %c0_i32, %c0_i32_0, %c0_i32_1 : i32, i32, i32, i32
  }
  func.func @transform_1(%arg0: i32, %arg1: i32) -> (i32, i32) {
    %c0_i32 = arith.constant 0 : i32
    %c0_i32_0 = arith.constant 0 : i32
    %c0_i32_1 = arith.constant 0 : i32
    return %c0_i32, %c0_i32_0 : i32, i32
  }
  func.func @transform_2(%arg0: i32, %arg1: i32) -> (i32, i32) {
    %c0_i32 = arith.constant 0 : i32
    %c0_i32_0 = arith.constant 0 : i32
    %c0_i32_1 = arith.constant 0 : i32
    return %c0_i32, %c0_i32_0 : i32, i32
  }
  func.func @transform_3(%arg0: i32, %arg1: i32) -> (i32, i32, i32, i32) {
    %c0_i32 = arith.constant 0 : i32
    %c0_i32_0 = arith.constant 0 : i32
    %c0_i32_1 = arith.constant 0 : i32
    return %arg0, %arg1, %c0_i32, %c0_i32_0 : i32, i32, i32, i32
  }
}

</mosaic_0001>

<llo_original>
// kernel: tpu_custom_call.1
$region0: #{tpu_custom_call.1}
  #allocation0 [shape = 'u32[]', space=smem, size = 0x4, offset = 0x4, fixed_abs, tag = 'smem constant byte address 0x4 - core index']
  #allocation1 [shape = 'u32[72,128]{1,0:T(1,128)}', space=vmem, size = 0x9000, scoped, tag = 'internal scratch']
  %s0 = inlined_call_operand.vmem [shape: f32[4,10,18,4], index: 0, kind: input, shape index: {}]
  %s1 = inlined_call_operand.vmem [shape: f32[36,128], index: 1, kind: input, shape index: {}]
  %s2 = inlined_call_operand.vmem [shape: f32[1,128], index: 2, kind: input, shape index: {}]
  %s3 = inlined_call_operand.hbm [shape: f32[2,8,8,128], index: 3, kind: output, shape index: {}]
  %s4 = sld [smem:[#allocation0]]
  $region45: #{tpu_custom_call.1} parent=0
    _
  %s6 = ssub.s32 1, %s4
  %s7 = scalar_select 0, %s6, %s4
  $region1: #{tpu_custom_call.1} parent=0
    #allocation2 [shape = 'u8[32768]{0}', space=vmem, size = 0x8000, scoped, tag = 'output window, operand 0']
    #allocation3 [shape = 's32[2]{0}', space=sflag, size = 0x8, scoped, tag = 'scoped memory for tpu_custom_call.1']
    %8 = vsyncpa [#allocation3], 0
    %s9 = scalar_lea.sflag [#allocation3], 1
    %10 = vsyncpa %s9, 0
    loop: start=0, step=1, limit=6
    $region2: #{tpu_custom_call.1} parent=1 // loop_pre_header
      _
    $region3: #{tpu_custom_call.1} parent=1 // loop_header
      %s12 = sphi 0, %s16
      %p13 = scmp.ge.s32.totalorder %s12, 6
      %s19 = sphi 0, %s31
      %s20 = sphi 0, %s27
      %s21 = sphi 0, %s19
      %s22 = sphi 0, %s20
      %s23 = sphi 0, %s21
      %s24 = sphi 0, %s22
      %s38 = sphi 0, %s40
      %s41 = sphi 0, %s38
      %s42 = sphi 0, %s41
      %s58 = sphi 0, %s42
      %s62 = sphi 0, %s62
      %s64 = sphi 0, %s62
      %s65 = sphi 0, %s64
      %s79 = sphi 0, %s65
      %s83 = sphi 0, %s83
      %s85 = sphi 0, %s83
      %s86 = sphi 0, %s85
      %s100 = sphi 0, %s86
      %s108 = sphi 0, %s110
      %s111 = sphi 0, %s108
      %s112 = sphi 0, %s111
      %s128 = sphi 0, %s112
    $region4: #{tpu_custom_call.1} parent=1 // loop_header_branch
      %15 = sbr.rel (%p13) target = $region8
    $region5: #{tpu_custom_call.1} parent=1 // loop_body
      %s17 = ssub.s32 %s12, 1
      %s18 = ssub.s32 %s12, 2
      %s25 = sadd.s32 1, %s20
      %p26 = scmp.ge.s32.totalorder %s25, 2
      %s27 = scalar_select %p26, 0, %s25
      %s28 = sadd.s32 1, %s19
      %s29 = scalar_select %p26, %s28, %s19
      %p30 = scmp.ge.s32.totalorder %s29, 2
      %s31 = scalar_select %p30, 0, %s29
      %s32 = smul.u32 %s19, 2
      %s33 = sadd.s32 %s32, %s20
      %s34 = smul.u32 %s31, 2
      %s35 = sadd.s32 %s34, %s27
      %s36 = ssub.s32 %s33, %s35
      %p37 = scmp.eq.s32.totalorder %s36, 0
      %s39 = sadd.s32 %s38, 1
      %s40 = scalar_select %p37, %s38, %s39
      %p43 = pneg %p37
      %p44 = scmp.eq.s32.totalorder %s12, 3
      %p45 = por %p43, %p44
      %p46 = scmp.ne.s32.totalorder %s38, %s41
      %p47 = scmp.eq.s32.totalorder %s12, 0
      %p48 = por %p46, %p47
      %p49 = scmp.ne.s32.totalorder %s38, %s41
      %p50 = scmp.eq.s32.totalorder %s17, 3
      %p51 = por %p49, %p50
      %p52 = scmp.ne.s32.totalorder %s41, %s42
      %p53 = scmp.eq.s32.totalorder %s17, 0
      %p54 = por %p52, %p53
      %p55 = scmp.ne.s32.totalorder %s41, %s42
      %p56 = scmp.eq.s32.totalorder %s18, 3
      %p57 = por %p55, %p56
      %p59 = scmp.ne.s32.totalorder %s42, %s58
      %p60 = scmp.eq.s32.totalorder %s18, 0
      %p61 = por %p59, %p60
      %s63 = sadd.s32 %s62, 1
      %p66 = scmp.eq.s32.totalorder %s12, 3
      %p67 = scmp.ne.s32.totalorder %s62, %s64
      %p68 = scmp.eq.s32.totalorder %s12, 0
      %p69 = por %p67, %p68
      %p70 = scmp.ne.s32.totalorder %s62, %s64
      %p71 = scmp.eq.s32.totalorder %s17, 3
      %p72 = por %p70, %p71
      %p73 = scmp.ne.s32.totalorder %s64, %s65
      %p74 = scmp.eq.s32.totalorder %s17, 0
      %p75 = por %p73, %p74
      %p76 = scmp.ne.s32.totalorder %s64, %s65
      %p77 = scmp.eq.s32.totalorder %s18, 3
      %p78 = por %p76, %p77
      %p80 = scmp.ne.s32.totalorder %s65, %s79
      %p81 = scmp.eq.s32.totalorder %s18, 0
      %p82 = por %p80, %p81
      %s84 = sadd.s32 %s83, 1
      %p87 = scmp.eq.s32.totalorder %s12, 3
      %p88 = scmp.ne.s32.totalorder %s83, %s85
      %p89 = scmp.eq.s32.totalorder %s12, 0
      %p90 = por %p88, %p89
      %p91 = scmp.ne.s32.totalorder %s83, %s85
      %p92 = scmp.eq.s32.totalorder %s17, 3
      %p93 = por %p91, %p92
      %p94 = scmp.ne.s32.totalorder %s85, %s86
      %p95 = scmp.eq.s32.totalorder %s17, 0
      %p96 = por %p94, %p95
      %p97 = scmp.ne.s32.totalorder %s85, %s86
      %p98 = scmp.eq.s32.totalorder %s18, 3
      %p99 = por %p97, %p98
      %p101 = scmp.ne.s32.totalorder %s86, %s100
      %p102 = scmp.eq.s32.totalorder %s18, 0
      %p103 = por %p101, %p102
      %s104 = ssub.s32 %s19, %s31
      %s105 = ssub.s32 %s20, %s27
      %s106 = sor.u32 %s104, %s105
      %p107 = scmp.eq.s32.totalorder %s106, 0
      %s109 = sadd.s32 %s108, 1
      %s110 = scalar_select %p107, %s108, %s109
      %p113 = pneg %p107
      %p114 = scmp.eq.s32.totalorder %s12, 3
      %p115 = por %p113, %p114
      %p116 = scmp.ne.s32.totalorder %s108, %s111
      %p117 = scmp.eq.s32.totalorder %s12, 0
      %p118 = por %p116, %p117
      %p119 = scmp.ne.s32.totalorder %s108, %s111
      %p120 = scmp.eq.s32.totalorder %s17, 3
      %p121 = por %p119, %p120
      %p122 = scmp.ne.s32.totalorder %s111, %s112
      %p123 = scmp.eq.s32.totalorder %s17, 0
      %p124 = por %p122, %p123
      %p125 = scmp.ne.s32.totalorder %s111, %s112
      %p126 = scmp.eq.s32.totalorder %s18, 3
      %p127 = por %p125, %p126
      %p129 = scmp.ne.s32.totalorder %s112, %s128
      %p130 = scmp.eq.s32.totalorder %s18, 0
      %p131 = por %p129, %p130
      %p132 = scmp.le.s32.totalorder 1, %s12
      %p133 = scmp.lt.s32.totalorder %s12, 5
      %p134 = pnand %p132, %p133
      %p135 = pneg %p134
      // Predicated region
      $region9: #{tpu_custom_call.1} parent=5 // pred_check
        _
      $region10: #{tpu_custom_call.1} parent=5 // pred_check_branch
        %137 = sbr.rel (%p134) target = $region12
      $region11: #{tpu_custom_call.1} parent=5 // pred_region
        %s138 = ssub.s32 %s12, 1
        // Predicated region
        $region13: #{tpu_custom_call.1} parent=11 // pred_check
          %p139 = pneg %p75
        $region14: #{tpu_custom_call.1} parent=11 // pred_check_branch
          %141 = sbr.rel (%p139) target = $region16
        $region15: #{tpu_custom_call.1} parent=11 // pred_region
          _
        $region16: #{tpu_custom_call.1} parent=11 // pred_fallthru
          _
        // Predicated region
        $region17: #{tpu_custom_call.1} parent=11 // pred_check
          %p142 = pneg %p96
        $region18: #{tpu_custom_call.1} parent=11 // pred_check_branch
          %144 = sbr.rel (%p142) target = $region20
        $region19: #{tpu_custom_call.1} parent=11 // pred_region
          _
        $region20: #{tpu_custom_call.1} parent=11 // pred_fallthru
          _
      $region12: #{tpu_custom_call.1} parent=5 // pred_fallthru
        _
      %p145 = scmp.lt.s32.totalorder %s12, 4
      // Predicated region
      $region21: #{tpu_custom_call.1} parent=5 // pred_check
        %p146 = pneg %p145
      $region22: #{tpu_custom_call.1} parent=5 // pred_check_branch
        %148 = sbr.rel (%p146) target = $region24
      $region23: #{tpu_custom_call.1} parent=5 // pred_region
        // Predicated region
        $region25: #{tpu_custom_call.1} parent=23 // pred_check
          %p149 = pneg %p48
        $region26: #{tpu_custom_call.1} parent=23 // pred_check_branch
          %151 = sbr.rel (%p149) target = $region28
        $region27: #{tpu_custom_call.1} parent=23 // pred_region
          %s152 = smul.u32 %s19, 2
          %s153 = sadd.s32 %s152, %s20
          %p154 = scmp.lt.s32.totalorder %s153, 3
          %s155 = scalar_select %p154, %s153, 3
          %s156 = smul.addr %s155, 30
          %s157 = smul.addr %s156, 8
          %s158 = scalar_lea.vmem %s0, %s157
          %s159 = smul.u32 %s19, 2
          %s160 = sadd.s32 %s159, %s20
        $region28: #{tpu_custom_call.1} parent=23 // pred_fallthru
          _
      $region24: #{tpu_custom_call.1} parent=5 // pred_fallthru
        _
      %p161 = scmp.le.s32.totalorder 1, %s12
      %p162 = scmp.lt.s32.totalorder %s12, 5
      %p163 = pnand %p161, %p162
      %p164 = pneg %p163
      // Predicated region
      $region29: #{tpu_custom_call.1} parent=5 // pred_check
        _
      $region30: #{tpu_custom_call.1} parent=5 // pred_check_branch
        %166 = sbr.rel (%p163) target = $region32
      $region31: #{tpu_custom_call.1} parent=5 // pred_region
        %s167 = ssub.s32 %s12, 1
        %s168 = smul.u32 %s21, 2
        %s169 = sadd.s32 %s168, %s22
        %p170 = scmp.lt.s32.totalorder %s169, 3
        %s171 = scalar_select %p170, %s169, 3
        %s172 = smul.addr %s171, 30
        %s173 = smul.addr %s172, 8
        %s174 = scalar_lea.vmem %s0, %s173
        %p175 = pneg %p54
        %p176 = pneg %p51
        %p177 = pneg %p75
        %p178 = pneg %p72
        %p179 = pneg %p96
        %p180 = pneg %p93
        %p181 = pneg %p124
        %p182 = pneg %p121
        %s183 = sand.u32 %s111, 1
        %s184 = scalar_lea.sflag [#allocation3], %s183
        %s185 = sand.u32 %s111, 1
        %s186 = smul.addr %s185, 32
        %s187 = scalar_lea.vmem [#allocation2], %s186
        %s188 = smul.u32 %s21, 2
        %s189 = sadd.s32 %s188, %s22
        %p190 = scmp.lt.s32.totalorder %s189, 3
        %s191 = scalar_select %p190, %s189, 3
        %s192 = smul.addr %s191, 30
        %s193 = smul.addr %s192, 8
        %s194 = scalar_lea.vmem %s0, %s193
        %s195 = smul.u32 %s21, 2
        %s196 = sadd.s32 %s195, %s22
        %s197 = smul.u32 4, %s22
        %v198 = vld [vmem:[%s194] sm:$0xff]
        %v199 = vld [vmem:[%s194 + $0x8] sm:$0xff]
        %v200 = vld [vmem:[%s194 + $0x10] sm:$0x3]
        %v201 = vld [vmem:[%s194 + $0x18] sm:$0xff]
        %v202 = vld [vmem:[%s194 + $0x20] sm:$0xff]
        %v203 = vld [vmem:[%s194 + $0x28] sm:$0x3]
        %v204 = vld [vmem:[%s194 + $0x30] sm:$0xff]
        %v205 = vld [vmem:[%s194 + $0x38] sm:$0xff]
        %v206 = vld [vmem:[%s194 + $0x40] sm:$0x3]
        %v207 = vld [vmem:[%s194 + $0x48] sm:$0xff]
        %v208 = vld [vmem:[%s194 + $0x50] sm:$0xff]
        %v209 = vld [vmem:[%s194 + $0x58] sm:$0x3]
        %v210 = vld [vmem:[%s194 + $0x60] sm:$0xff]
        %v211 = vld [vmem:[%s194 + $0x68] sm:$0xff]
        %v212 = vld [vmem:[%s194 + $0x70] sm:$0x3]
        %v213 = vld [vmem:[%s194 + $0x78] sm:$0xff]
        %v214 = vld [vmem:[%s194 + $0x80] sm:$0xff]
        %v215 = vld [vmem:[%s194 + $0x88] sm:$0x3]
        %v216 = vld [vmem:[%s194 + $0x90] sm:$0xff]
        %v217 = vld [vmem:[%s194 + $0x98] sm:$0xff]
        %v218 = vld [vmem:[%s194 + $0xa0] sm:$0x3]
        %v219 = vld [vmem:[%s194 + $0xa8] sm:$0xff]
        %v220 = vld [vmem:[%s194 + $0xb0] sm:$0xff]
        %v221 = vld [vmem:[%s194 + $0xb8] sm:$0x3]
        %v222 = vld [vmem:[%s194 + $0xc0] sm:$0xff]
        %v223 = vld [vmem:[%s194 + $0xc8] sm:$0xff]
        %v224 = vld [vmem:[%s194 + $0xd0] sm:$0x3]
        %v225 = vld [vmem:[%s194 + $0xd8] sm:$0xff]
        %v226 = vld [vmem:[%s194 + $0xe0] sm:$0xff]
        %v227 = vld [vmem:[%s194 + $0xe8] sm:$0x3]
        %v228 = vld [vmem:[%s1] sm:$0xf]
        %vm253 = vcmask 1046528
        %v254 = vrot.slane %v198, 1
        %v255 = vrot.slane %v199, 1
        %v256 = vsel %vm253, %v254, %v255
        %v257 = vrot.slane %v200, 1
        %v258 = vsel %vm253, %v255, %v257
        %v259 = vrot.slane %v201, 1
        %v260 = vrot.slane %v202, 1
        %v261 = vsel %vm253, %v259, %v260
        %v262 = vrot.slane %v203, 1
        %v263 = vsel %vm253, %v260, %v262
        %v264 = vrot.slane %v204, 1
        %v265 = vrot.slane %v205, 1
        %v266 = vsel %vm253, %v264, %v265
        %v267 = vrot.slane %v206, 1
        %v268 = vsel %vm253, %v265, %v267
        %v269 = vrot.slane %v207, 1
        %v270 = vrot.slane %v208, 1
        %v271 = vsel %vm253, %v269, %v270
        %v272 = vrot.slane %v209, 1
        %v273 = vsel %vm253, %v270, %v272
        %v274 = vrot.slane %v210, 1
        %v275 = vrot.slane %v211, 1
        %v276 = vsel %vm253, %v274, %v275
        %v277 = vrot.slane %v212, 1
        %v278 = vsel %vm253, %v275, %v277
        %v279 = vrot.slane %v213, 1
        %v280 = vrot.slane %v214, 1
        %v281 = vsel %vm253, %v279, %v280
        %v282 = vrot.slane %v215, 1
        %v283 = vsel %vm253, %v280, %v282
        %v284 = vrot.slane %v216, 1
        %v285 = vrot.slane %v217, 1
        %v286 = vsel %vm253, %v284, %v285
        %v287 = vrot.slane %v218, 1
        %v288 = vsel %vm253, %v285, %v287
        %v289 = vrot.slane %v219, 1
        %v290 = vrot.slane %v220, 1
        %v291 = vsel %vm253, %v289, %v290
        %v292 = vrot.slane %v221, 1
        %v293 = vsel %vm253, %v290, %v292
        %v294 = vld [vmem:[%s1 + $0x4] sm:$0xf]
        %vm295 = vcmask 31744
        %v296 = vsel %vm295, %v256, 0
        %v298 = vsel %vm295, %v258, 0
        %v300 = vsel %vm295, %v261, 0
        %v302 = vsel %vm295, %v263, 0
        %v304 = vsel %vm295, %v266, 0
        %v306 = vsel %vm295, %v268, 0
        %v308 = vsel %vm295, %v271, 0
        %v310 = vsel %vm295, %v273, 0
        %v312 = vsel %vm295, %v276, 0
        %v314 = vsel %vm295, %v278, 0
        %v316 = vsel %vm295, %v281, 0
        %v318 = vsel %vm295, %v283, 0
        %v320 = vsel %vm295, %v286, 0
        %v322 = vsel %vm295, %v288, 0
        %v324 = vsel %vm295, %v291, 0
        %v326 = vsel %vm295, %v293, 0
        %vm328 = vcmask 1043456
        %v330 = vsel %vm328, %v294, 0
        %332 = vmatpush.msra.mxu0 0.0
        %333 = vmatpush.msra.mxu0 0.0
        %334 = vmatpush.msra.mxu0 0.0
        %335 = vmatpush.msra.mxu0 0.0
        %336 = vmatpush.msra.mxu0 0.0
        %337 = vmatpush.msra.mxu0 0.0
        %338 = vmatpush.msra.mxu0 0.0
        %339 = vmatpush.msra.mxu0 0.0
        %340 = vmatpush.msra.mxu0 0.0
        %341 = vmatpush.msra.mxu0 0.0
        %342 = vmatpush.msra.mxu0 0.0
        %343 = vmatpush.msra.mxu0 0.0
        %344 = vmatpush.msra.mxu0 0.0
        %345 = vmatpush.msra.mxu0 0.0
        %346 = vmatpush.msra.mxu0 0.0
        %347 = vmatpush.msra.mxu0 %v330
        %348 = vmatmul.f32.gmra.mxu0 %v296
        %v349 = vpop.f32.mrf.mxu0
        %v350 = vadd.f32 0.0, %v349
        %351 = vmatmul.f32.gmra.mxu0 %v298
        %v352 = vpop.f32.mrf.mxu0
        %v353 = vadd.f32 0.0, %v352
        %354 = vmatmul.f32.gmra.mxu0 %v300
        %v355 = vpop.f32.mrf.mxu0
        %v356 = vadd.f32 0.0, %v355
        %357 = vmatmul.f32.gmra.mxu0 %v302
        %v358 = vpop.f32.mrf.mxu0
        %v359 = vadd.f32 0.0, %v358
        %360 = vmatmul.f32.gmra.mxu0 %v304
        %v361 = vpop.f32.mrf.mxu0
        %v362 = vadd.f32 0.0, %v361
        %363 = vmatmul.f32.gmra.mxu0 %v306
        %v364 = vpop.f32.mrf.mxu0
        %v365 = vadd.f32 0.0, %v364
        %366 = vmatmul.f32.gmra.mxu0 %v308
        %v367 = vpop.f32.mrf.mxu0
        %v368 = vadd.f32 0.0, %v367
        %369 = vmatmul.f32.gmra.mxu0 %v310
        %v370 = vpop.f32.mrf.mxu0
        %v371 = vadd.f32 0.0, %v370
        %372 = vmatmul.f32.gmra.mxu0 %v312
        %v373 = vpop.f32.mrf.mxu0
        %v374 = vadd.f32 0.0, %v373
        %375 = vmatmul.f32.gmra.mxu0 %v314
        %v376 = vpop.f32.mrf.mxu0
        %v377 = vadd.f32 0.0, %v376
        %378 = vmatmul.f32.gmra.mxu0 %v316
        %v379 = vpop.f32.mrf.mxu0
        %v380 = vadd.f32 0.0, %v379
        %381 = vmatmul.f32.gmra.mxu0 %v318
        %v382 = vpop.f32.mrf.mxu0
        %v383 = vadd.f32 0.0, %v382
        %384 = vmatmul.f32.gmra.mxu0 %v320
        %v385 = vpop.f32.mrf.mxu0
        %v386 = vadd.f32 0.0, %v385
        %387 = vmatmul.f32.gmra.mxu0 %v322
        %v388 = vpop.f32.mrf.mxu0
        %v389 = vadd.f32 0.0, %v388
        %390 = vmatmul.f32.gmra.mxu0 %v324
        %v391 = vpop.f32.mrf.mxu0
        %v392 = vadd.f32 0.0, %v391
        %393 = vmatmul.f32.gmra.mxu0 %v326
        %v394 = vpop.f32.mrf.mxu0
        %v395 = vadd.f32 0.0, %v394
        %396 = vdwg.mxu0
        %v397 = vsel %vm295, %v198, 0
        %v399 = vsel %vm295, %v199, 0
        %v401 = vsel %vm295, %v201, 0
        %v403 = vsel %vm295, %v202, 0
        %v405 = vsel %vm295, %v204, 0
        %v407 = vsel %vm295, %v205, 0
        %v409 = vsel %vm295, %v207, 0
        %v411 = vsel %vm295, %v208, 0
        %v413 = vsel %vm295, %v210, 0
        %v415 = vsel %vm295, %v211, 0
        %v417 = vsel %vm295, %v213, 0
        %v419 = vsel %vm295, %v214, 0
        %v421 = vsel %vm295, %v216, 0
        %v423 = vsel %vm295, %v217, 0
        %v425 = vsel %vm295, %v219, 0
        %v427 = vsel %vm295, %v220, 0
        %v430 = vsel %vm328, %v228, 0
        %432 = vmatpush.msra.mxu0 0.0
        %433 = vmatpush.msra.mxu0 0.0
        %434 = vmatpush.msra.mxu0 0.0
        %435 = vmatpush.msra.mxu0 0.0
        %436 = vmatpush.msra.mxu0 0.0
        %437 = vmatpush.msra.mxu0 0.0
        %438 = vmatpush.msra.mxu0 0.0
        %439 = vmatpush.msra.mxu0 0.0
        %440 = vmatpush.msra.mxu0 0.0
        %441 = vmatpush.msra.mxu0 0.0
        %442 = vmatpush.msra.mxu0 0.0
        %443 = vmatpush.msra.mxu0 0.0
        %444 = vmatpush.msra.mxu0 0.0
        %445 = vmatpush.msra.mxu0 0.0
        %446 = vmatpush.msra.mxu0 0.0
        %447 = vmatpush.msra.mxu0 %v430
        %448 = vmatmul.f32.gmra.mxu0 %v397
        %v449 = vpop.f32.mrf.mxu0
        %v450 = vadd.f32 %v350, %v449
        %451 = vmatmul.f32.gmra.mxu0 %v399
        %v452 = vpop.f32.mrf.mxu0
        %v453 = vadd.f32 %v353, %v452
        %454 = vmatmul.f32.gmra.mxu0 %v401
        %v455 = vpop.f32.mrf.mxu0
        %v456 = vadd.f32 %v356, %v455
        %457 = vmatmul.f32.gmra.mxu0 %v403
        %v458 = vpop.f32.mrf.mxu0
        %v459 = vadd.f32 %v359, %v458
        %460 = vmatmul.f32.gmra.mxu0 %v405
        %v461 = vpop.f32.mrf.mxu0
        %v462 = vadd.f32 %v362, %v461
        %463 = vmatmul.f32.gmra.mxu0 %v407
        %v464 = vpop.f32.mrf.mxu0
        %v465 = vadd.f32 %v365, %v464
        %466 = vmatmul.f32.gmra.mxu0 %v409
        %v467 = vpop.f32.mrf.mxu0
        %v468 = vadd.f32 %v368, %v467
        %469 = vmatmul.f32.gmra.mxu0 %v411
        %v470 = vpop.f32.mrf.mxu0
        %v471 = vadd.f32 %v371, %v470
        %472 = vmatmul.f32.gmra.mxu0 %v413
        %v473 = vpop.f32.mrf.mxu0
        %v474 = vadd.f32 %v374, %v473
        %475 = vmatmul.f32.gmra.mxu0 %v415
        %v476 = vpop.f32.mrf.mxu0
        %v477 = vadd.f32 %v377, %v476
        %478 = vmatmul.f32.gmra.mxu0 %v417
        %v479 = vpop.f32.mrf.mxu0
        %v480 = vadd.f32 %v380, %v479
        %481 = vmatmul.f32.gmra.mxu0 %v419
        %v482 = vpop.f32.mrf.mxu0
        %v483 = vadd.f32 %v383, %v482
        %484 = vmatmul.f32.gmra.mxu0 %v421
        %v485 = vpop.f32.mrf.mxu0
        %v486 = vadd.f32 %v386, %v485
        %487 = vmatmul.f32.gmra.mxu0 %v423
        %v488 = vpop.f32.mrf.mxu0
        %v489 = vadd.f32 %v389, %v488
        %490 = vmatmul.f32.gmra.mxu0 %v425
        %v491 = vpop.f32.mrf.mxu0
        %v492 = vadd.f32 %v392, %v491
        %493 = vmatmul.f32.gmra.mxu0 %v427
        %v494 = vpop.f32.mrf.mxu0
        %v495 = vadd.f32 %v395, %v494
        %496 = vdwg.mxu0
        %vm497 = vcmask 1045504
        %v498 = vrot.slane %v198, 2
        %v499 = vrot.slane %v199, 2
        %v500 = vsel %vm497, %v498, %v499
        %v501 = vrot.slane %v200, 2
        %v502 = vsel %vm497, %v499, %v501
        %v503 = vrot.slane %v201, 2
        %v504 = vrot.slane %v202, 2
        %v505 = vsel %vm497, %v503, %v504
        %v506 = vrot.slane %v203, 2
        %v507 = vsel %vm497, %v504, %v506
        %v508 = vrot.slane %v204, 2
        %v509 = vrot.slane %v205, 2
        %v510 = vsel %vm497, %v508, %v509
        %v511 = vrot.slane %v206, 2
        %v512 = vsel %vm497, %v509, %v511
        %v513 = vrot.slane %v207, 2
        %v514 = vrot.slane %v208, 2
        %v515 = vsel %vm497, %v513, %v514
        %v516 = vrot.slane %v209, 2
        %v517 = vsel %vm497, %v514, %v516
        %v518 = vrot.slane %v210, 2
        %v519 = vrot.slane %v211, 2
        %v520 = vsel %vm497, %v518, %v519
        %v521 = vrot.slane %v212, 2
        %v522 = vsel %vm497, %v519, %v521
        %v523 = vrot.slane %v213, 2
        %v524 = vrot.slane %v214, 2
        %v525 = vsel %vm497, %v523, %v524
        %v526 = vrot.slane %v215, 2
        %v527 = vsel %vm497, %v524, %v526
        %v528 = vrot.slane %v216, 2
        %v529 = vrot.slane %v217, 2
        %v530 = vsel %vm497, %v528, %v529
        %v531 = vrot.slane %v218, 2
        %v532 = vsel %vm497, %v529, %v531
        %v533 = vrot.slane %v219, 2
        %v534 = vrot.slane %v220, 2
        %v535 = vsel %vm497, %v533, %v534
        %v536 = vrot.slane %v221, 2
        %v537 = vsel %vm497, %v534, %v536
        %v538 = vld [vmem:[%s1 + $0x8] sm:$0xf]
        %v539 = vsel %vm295, %v500, 0
        %v541 = vsel %vm295, %v502, 0
        %v543 = vsel %vm295, %v505, 0
        %v545 = vsel %vm295, %v507, 0
        %v547 = vsel %vm295, %v510, 0
        %v549 = vsel %vm295, %v512, 0
        %v551 = vsel %vm295, %v515, 0
        %v553 = vsel %vm295, %v517, 0
        %v555 = vsel %vm295, %v520, 0
        %v557 = vsel %vm295, %v522, 0
        %v559 = vsel %vm295, %v525, 0
        %v561 = vsel %vm295, %v527, 0
        %v563 = vsel %vm295, %v530, 0
        %v565 = vsel %vm295, %v532, 0
        %v567 = vsel %vm295, %v535, 0
        %v569 = vsel %vm295, %v537, 0
        %v572 = vsel %vm328, %v538, 0
        %574 = vmatpush.msra.mxu0 0.0
        %575 = vmatpush.msra.mxu0 0.0
        %576 = vmatpush.msra.mxu0 0.0
        %577 = vmatpush.msra.mxu0 0.0
        %578 = vmatpush.msra.mxu0 0.0
        %579 = vmatpush.msra.mxu0 0.0
        %580 = vmatpush.msra.mxu0 0.0
        %581 = vmatpush.msra.mxu0 0.0
        %582 = vmatpush.msra.mxu0 0.0
        %583 = vmatpush.msra.mxu0 0.0
        %584 = vmatpush.msra.mxu0 0.0
        %585 = vmatpush.msra.mxu0 0.0
        %586 = vmatpush.msra.mxu0 0.0
        %587 = vmatpush.msra.mxu0 0.0
        %588 = vmatpush.msra.mxu0 0.0
        %589 = vmatpush.msra.mxu0 %v572
        %590 = vmatmul.f32.gmra.mxu0 %v539
        %v591 = vpop.f32.mrf.mxu0
        %v592 = vadd.f32 0.0, %v591
        %593 = vmatmul.f32.gmra.mxu0 %v541
        %v594 = vpop.f32.mrf.mxu0
        %v595 = vadd.f32 0.0, %v594
        %596 = vmatmul.f32.gmra.mxu0 %v543
        %v597 = vpop.f32.mrf.mxu0
        %v598 = vadd.f32 0.0, %v597
        %599 = vmatmul.f32.gmra.mxu0 %v545
        %v600 = vpop.f32.mrf.mxu0
        %v601 = vadd.f32 0.0, %v600
        %602 = vmatmul.f32.gmra.mxu0 %v547
        %v603 = vpop.f32.mrf.mxu0
        %v604 = vadd.f32 0.0, %v603
        %605 = vmatmul.f32.gmra.mxu0 %v549
        %v606 = vpop.f32.mrf.mxu0
        %v607 = vadd.f32 0.0, %v606
        %608 = vmatmul.f32.gmra.mxu0 %v551
        %v609 = vpop.f32.mrf.mxu0
        %v610 = vadd.f32 0.0, %v609
        %611 = vmatmul.f32.gmra.mxu0 %v553
        %v612 = vpop.f32.mrf.mxu0
        %v613 = vadd.f32 0.0, %v612
        %614 = vmatmul.f32.gmra.mxu0 %v555
        %v615 = vpop.f32.mrf.mxu0
        %v616 = vadd.f32 0.0, %v615
        %617 = vmatmul.f32.gmra.mxu0 %v557
        %v618 = vpop.f32.mrf.mxu0
        %v619 = vadd.f32 0.0, %v618
        %620 = vmatmul.f32.gmra.mxu0 %v559
        %v621 = vpop.f32.mrf.mxu0
        %v622 = vadd.f32 0.0, %v621
        %623 = vmatmul.f32.gmra.mxu0 %v561
        %v624 = vpop.f32.mrf.mxu0
        %v625 = vadd.f32 0.0, %v624
        %626 = vmatmul.f32.gmra.mxu0 %v563
        %v627 = vpop.f32.mrf.mxu0
        %v628 = vadd.f32 0.0, %v627
        %629 = vmatmul.f32.gmra.mxu0 %v565
        %v630 = vpop.f32.mrf.mxu0
        %v631 = vadd.f32 0.0, %v630
        %632 = vmatmul.f32.gmra.mxu0 %v567
        %v633 = vpop.f32.mrf.mxu0
        %v634 = vadd.f32 0.0, %v633
        %635 = vmatmul.f32.gmra.mxu0 %v569
        %v636 = vpop.f32.mrf.mxu0
        %v637 = vadd.f32 0.0, %v636
        %638 = vdwg.mxu0
        %v639 = vadd.f32 %v450, %v592
        %v640 = vadd.f32 %v453, %v595
        %v641 = vadd.f32 %v456, %v598
        %v642 = vadd.f32 %v459, %v601
        %v643 = vadd.f32 %v462, %v604
        %v644 = vadd.f32 %v465, %v607
        %v645 = vadd.f32 %v468, %v610
        %v646 = vadd.f32 %v471, %v613
        %v647 = vadd.f32 %v474, %v616
        %v648 = vadd.f32 %v477, %v619
        %v649 = vadd.f32 %v480, %v622
        %v650 = vadd.f32 %v483, %v625
        %v651 = vadd.f32 %v486, %v628
        %v652 = vadd.f32 %v489, %v631
        %v653 = vadd.f32 %v492, %v634
        %v654 = vadd.f32 %v495, %v637
        %v655 = vld [vmem:[%s1 + $0xc] sm:$0xf]
        %v657 = vsel %vm295, %v222, 0
        %v660 = vsel %vm295, %v223, 0
        %v663 = vsel %vm328, %v655, 0
        %665 = vmatpush.msra.mxu0 0.0
        %666 = vmatpush.msra.mxu0 0.0
        %667 = vmatpush.msra.mxu0 0.0
        %668 = vmatpush.msra.mxu0 0.0
        %669 = vmatpush.msra.mxu0 0.0
        %670 = vmatpush.msra.mxu0 0.0
        %671 = vmatpush.msra.mxu0 0.0
        %672 = vmatpush.msra.mxu0 0.0
        %673 = vmatpush.msra.mxu0 0.0
        %674 = vmatpush.msra.mxu0 0.0
        %675 = vmatpush.msra.mxu0 0.0
        %676 = vmatpush.msra.mxu0 0.0
        %677 = vmatpush.msra.mxu0 0.0
        %678 = vmatpush.msra.mxu0 0.0
        %679 = vmatpush.msra.mxu0 0.0
        %680 = vmatpush.msra.mxu0 %v663
        %681 = vmatmul.f32.gmra.mxu0 %v401
        %v682 = vpop.f32.mrf.mxu0
        %v683 = vadd.f32 0.0, %v682
        %684 = vmatmul.f32.gmra.mxu0 %v403
        %v685 = vpop.f32.mrf.mxu0
        %v686 = vadd.f32 0.0, %v685
        %687 = vmatmul.f32.gmra.mxu0 %v405
        %v688 = vpop.f32.mrf.mxu0
        %v689 = vadd.f32 0.0, %v688
        %690 = vmatmul.f32.gmra.mxu0 %v407
        %v691 = vpop.f32.mrf.mxu0
        %v692 = vadd.f32 0.0, %v691
        %693 = vmatmul.f32.gmra.mxu0 %v409
        %v694 = vpop.f32.mrf.mxu0
        %v695 = vadd.f32 0.0, %v694
        %696 = vmatmul.f32.gmra.mxu0 %v411
        %v697 = vpop.f32.mrf.mxu0
        %v698 = vadd.f32 0.0, %v697
        %699 = vmatmul.f32.gmra.mxu0 %v413
        %v700 = vpop.f32.mrf.mxu0
        %v701 = vadd.f32 0.0, %v700
        %702 = vmatmul.f32.gmra.mxu0 %v415
        %v703 = vpop.f32.mrf.mxu0
        %v704 = vadd.f32 0.0, %v703
        %705 = vmatmul.f32.gmra.mxu0 %v417
        %v706 = vpop.f32.mrf.mxu0
        %v707 = vadd.f32 0.0, %v706
        %708 = vmatmul.f32.gmra.mxu0 %v419
        %v709 = vpop.f32.mrf.mxu0
        %v710 = vadd.f32 0.0, %v709
        %711 = vmatmul.f32.gmra.mxu0 %v421
        %v712 = vpop.f32.mrf.mxu0
        %v713 = vadd.f32 0.0, %v712
        %714 = vmatmul.f32.gmra.mxu0 %v423
        %v715 = vpop.f32.mrf.mxu0
        %v716 = vadd.f32 0.0, %v715
        %717 = vmatmul.f32.gmra.mxu0 %v425
        %v718 = vpop.f32.mrf.mxu0
        %v719 = vadd.f32 0.0, %v718
        %720 = vmatmul.f32.gmra.mxu0 %v427
        %v721 = vpop.f32.mrf.mxu0
        %v722 = vadd.f32 0.0, %v721
        %723 = vmatmul.f32.gmra.mxu0 %v657
        %v724 = vpop.f32.mrf.mxu0
        %v725 = vadd.f32 0.0, %v724
        %726 = vmatmul.f32.gmra.mxu0 %v660
        %v727 = vpop.f32.mrf.mxu0
        %v728 = vadd.f32 0.0, %v727
        %729 = vdwg.mxu0
        %v730 = vadd.f32 %v639, %v683
        %v731 = vadd.f32 %v640, %v686
        %v732 = vadd.f32 %v641, %v689
        %v733 = vadd.f32 %v642, %v692
        %v734 = vadd.f32 %v643, %v695
        %v735 = vadd.f32 %v644, %v698
        %v736 = vadd.f32 %v645, %v701
        %v737 = vadd.f32 %v646, %v704
        %v738 = vadd.f32 %v647, %v707
        %v739 = vadd.f32 %v648, %v710
        %v740 = vadd.f32 %v649, %v713
        %v741 = vadd.f32 %v650, %v716
        %v742 = vadd.f32 %v651, %v719
        %v743 = vadd.f32 %v652, %v722
        %v744 = vadd.f32 %v653, %v725
        %v745 = vadd.f32 %v654, %v728
        %v747 = vrot.slane %v222, 1
        %v748 = vrot.slane %v223, 1
        %v749 = vsel %vm253, %v747, %v748
        %v750 = vrot.slane %v224, 1
        %v751 = vsel %vm253, %v748, %v750
        %v752 = vld [vmem:[%s1 + $0x10] sm:$0xf]
        %v753 = vsel %vm295, %v749, 0
        %v755 = vsel %vm295, %v751, 0
        %v758 = vsel %vm328, %v752, 0
        %760 = vmatpush.msra.mxu0 0.0
        %761 = vmatpush.msra.mxu0 0.0
        %762 = vmatpush.msra.mxu0 0.0
        %763 = vmatpush.msra.mxu0 0.0
        %764 = vmatpush.msra.mxu0 0.0
        %765 = vmatpush.msra.mxu0 0.0
        %766 = vmatpush.msra.mxu0 0.0
        %767 = vmatpush.msra.mxu0 0.0
        %768 = vmatpush.msra.mxu0 0.0
        %769 = vmatpush.msra.mxu0 0.0
        %770 = vmatpush.msra.mxu0 0.0
        %771 = vmatpush.msra.mxu0 0.0
        %772 = vmatpush.msra.mxu0 0.0
        %773 = vmatpush.msra.mxu0 0.0
        %774 = vmatpush.msra.mxu0 0.0
        %775 = vmatpush.msra.mxu0 %v758
        %776 = vmatmul.f32.gmra.mxu0 %v300
        %v777 = vpop.f32.mrf.mxu0
        %v778 = vadd.f32 0.0, %v777
        %779 = vmatmul.f32.gmra.mxu0 %v302
        %v780 = vpop.f32.mrf.mxu0
        %v781 = vadd.f32 0.0, %v780
        %782 = vmatmul.f32.gmra.mxu0 %v304
        %v783 = vpop.f32.mrf.mxu0
        %v784 = vadd.f32 0.0, %v783
        %785 = vmatmul.f32.gmra.mxu0 %v306
        %v786 = vpop.f32.mrf.mxu0
        %v787 = vadd.f32 0.0, %v786
        %788 = vmatmul.f32.gmra.mxu0 %v308
        %v789 = vpop.f32.mrf.mxu0
        %v790 = vadd.f32 0.0, %v789
        %791 = vmatmul.f32.gmra.mxu0 %v310
        %v792 = vpop.f32.mrf.mxu0
        %v793 = vadd.f32 0.0, %v792
        %794 = vmatmul.f32.gmra.mxu0 %v312
        %v795 = vpop.f32.mrf.mxu0
        %v796 = vadd.f32 0.0, %v795
        %797 = vmatmul.f32.gmra.mxu0 %v314
        %v798 = vpop.f32.mrf.mxu0
        %v799 = vadd.f32 0.0, %v798
        %800 = vmatmul.f32.gmra.mxu0 %v316
        %v801 = vpop.f32.mrf.mxu0
        %v802 = vadd.f32 0.0, %v801
        %803 = vmatmul.f32.gmra.mxu0 %v318
        %v804 = vpop.f32.mrf.mxu0
        %v805 = vadd.f32 0.0, %v804
        %806 = vmatmul.f32.gmra.mxu0 %v320
        %v807 = vpop.f32.mrf.mxu0
        %v808 = vadd.f32 0.0, %v807
        %809 = vmatmul.f32.gmra.mxu0 %v322
        %v810 = vpop.f32.mrf.mxu0
        %v811 = vadd.f32 0.0, %v810
        %812 = vmatmul.f32.gmra.mxu0 %v324
        %v813 = vpop.f32.mrf.mxu0
        %v814 = vadd.f32 0.0, %v813
        %815 = vmatmul.f32.gmra.mxu0 %v326
        %v816 = vpop.f32.mrf.mxu0
        %v817 = vadd.f32 0.0, %v816
        %818 = vmatmul.f32.gmra.mxu0 %v753
        %v819 = vpop.f32.mrf.mxu0
        %v820 = vadd.f32 0.0, %v819
        %821 = vmatmul.f32.gmra.mxu0 %v755
        %v822 = vpop.f32.mrf.mxu0
        %v823 = vadd.f32 0.0, %v822
        %824 = vdwg.mxu0
        %v825 = vadd.f32 %v730, %v778
        %v826 = vadd.f32 %v731, %v781
        %v827 = vadd.f32 %v732, %v784
        %v828 = vadd.f32 %v733, %v787
        %v829 = vadd.f32 %v734, %v790
        %v830 = vadd.f32 %v735, %v793
        %v831 = vadd.f32 %v736, %v796
        %v832 = vadd.f32 %v737, %v799
        %v833 = vadd.f32 %v738, %v802
        %v834 = vadd.f32 %v739, %v805
        %v835 = vadd.f32 %v740, %v808
        %v836 = vadd.f32 %v741, %v811
        %v837 = vadd.f32 %v742, %v814
        %v838 = vadd.f32 %v743, %v817
        %v839 = vadd.f32 %v744, %v820
        %v840 = vadd.f32 %v745, %v823
        %v841 = vrot.slane %v222, 2
        %v842 = vrot.slane %v223, 2
        %v843 = vsel %vm497, %v841, %v842
        %v844 = vrot.slane %v224, 2
        %v845 = vsel %vm497, %v842, %v844
        %v846 = vld [vmem:[%s1 + $0x14] sm:$0xf]
        %v847 = vsel %vm295, %v843, 0
        %v849 = vsel %vm295, %v845, 0
        %v852 = vsel %vm328, %v846, 0
        %854 = vmatpush.msra.mxu0 0.0
        %855 = vmatpush.msra.mxu0 0.0
        %856 = vmatpush.msra.mxu0 0.0
        %857 = vmatpush.msra.mxu0 0.0
        %858 = vmatpush.msra.mxu0 0.0
        %859 = vmatpush.msra.mxu0 0.0
        %860 = vmatpush.msra.mxu0 0.0
        %861 = vmatpush.msra.mxu0 0.0
        %862 = vmatpush.msra.mxu0 0.0
        %863 = vmatpush.msra.mxu0 0.0
        %864 = vmatpush.msra.mxu0 0.0
        %865 = vmatpush.msra.mxu0 0.0
        %866 = vmatpush.msra.mxu0 0.0
        %867 = vmatpush.msra.mxu0 0.0
        %868 = vmatpush.msra.mxu0 0.0
        %869 = vmatpush.msra.mxu0 %v852
        %870 = vmatmul.f32.gmra.mxu0 %v543
        %v871 = vpop.f32.mrf.mxu0
        %v872 = vadd.f32 0.0, %v871
        %873 = vmatmul.f32.gmra.mxu0 %v545
        %v874 = vpop.f32.mrf.mxu0
        %v875 = vadd.f32 0.0, %v874
        %876 = vmatmul.f32.gmra.mxu0 %v547
        %v877 = vpop.f32.mrf.mxu0
        %v878 = vadd.f32 0.0, %v877
        %879 = vmatmul.f32.gmra.mxu0 %v549
        %v880 = vpop.f32.mrf.mxu0
        %v881 = vadd.f32 0.0, %v880
        %882 = vmatmul.f32.gmra.mxu0 %v551
        %v883 = vpop.f32.mrf.mxu0
        %v884 = vadd.f32 0.0, %v883
        %885 = vmatmul.f32.gmra.mxu0 %v553
        %v886 = vpop.f32.mrf.mxu0
        %v887 = vadd.f32 0.0, %v886
        %888 = vmatmul.f32.gmra.mxu0 %v555
        %v889 = vpop.f32.mrf.mxu0
        %v890 = vadd.f32 0.0, %v889
        %891 = vmatmul.f32.gmra.mxu0 %v557
        %v892 = vpop.f32.mrf.mxu0
        %v893 = vadd.f32 0.0, %v892
        %894 = vmatmul.f32.gmra.mxu0 %v559
        %v895 = vpop.f32.mrf.mxu0
        %v896 = vadd.f32 0.0, %v895
        %897 = vmatmul.f32.gmra.mxu0 %v561
        %v898 = vpop.f32.mrf.mxu0
        %v899 = vadd.f32 0.0, %v898
        %900 = vmatmul.f32.gmra.mxu0 %v563
        %v901 = vpop.f32.mrf.mxu0
        %v902 = vadd.f32 0.0, %v901
        %903 = vmatmul.f32.gmra.mxu0 %v565
        %v904 = vpop.f32.mrf.mxu0
        %v905 = vadd.f32 0.0, %v904
        %906 = vmatmul.f32.gmra.mxu0 %v567
        %v907 = vpop.f32.mrf.mxu0
        %v908 = vadd.f32 0.0, %v907
        %909 = vmatmul.f32.gmra.mxu0 %v569
        %v910 = vpop.f32.mrf.mxu0
        %v911 = vadd.f32 0.0, %v910
        %912 = vmatmul.f32.gmra.mxu0 %v847
        %v913 = vpop.f32.mrf.mxu0
        %v914 = vadd.f32 0.0, %v913
        %915 = vmatmul.f32.gmra.mxu0 %v849
        %v916 = vpop.f32.mrf.mxu0
        %v917 = vadd.f32 0.0, %v916
        %918 = vdwg.mxu0
        %v919 = vadd.f32 %v825, %v872
        %v920 = vadd.f32 %v826, %v875
        %v921 = vadd.f32 %v827, %v878
        %v922 = vadd.f32 %v828, %v881
        %v923 = vadd.f32 %v829, %v884
        %v924 = vadd.f32 %v830, %v887
        %v925 = vadd.f32 %v831, %v890
        %v926 = vadd.f32 %v832, %v893
        %v927 = vadd.f32 %v833, %v896
        %v928 = vadd.f32 %v834, %v899
        %v929 = vadd.f32 %v835, %v902
        %v930 = vadd.f32 %v836, %v905
        %v931 = vadd.f32 %v837, %v908
        %v932 = vadd.f32 %v838, %v911
        %v933 = vadd.f32 %v839, %v914
        %v934 = vadd.f32 %v840, %v917
        %v935 = vld [vmem:[%s1 + $0x18] sm:$0xf]
        %v937 = vsel %vm295, %v225, 0
        %v940 = vsel %vm295, %v226, 0
        %v943 = vsel %vm328, %v935, 0
        %945 = vmatpush.msra.mxu0 0.0
        %946 = vmatpush.msra.mxu0 0.0
        %947 = vmatpush.msra.mxu0 0.0
        %948 = vmatpush.msra.mxu0 0.0
        %949 = vmatpush.msra.mxu0 0.0
        %950 = vmatpush.msra.mxu0 0.0
        %951 = vmatpush.msra.mxu0 0.0
        %952 = vmatpush.msra.mxu0 0.0
        %953 = vmatpush.msra.mxu0 0.0
        %954 = vmatpush.msra.mxu0 0.0
        %955 = vmatpush.msra.mxu0 0.0
        %956 = vmatpush.msra.mxu0 0.0
        %957 = vmatpush.msra.mxu0 0.0
        %958 = vmatpush.msra.mxu0 0.0
        %959 = vmatpush.msra.mxu0 0.0
        %960 = vmatpush.msra.mxu0 %v943
        %961 = vmatmul.f32.gmra.mxu0 %v405
        %v962 = vpop.f32.mrf.mxu0
        %v963 = vadd.f32 0.0, %v962
        %964 = vmatmul.f32.gmra.mxu0 %v407
        %v965 = vpop.f32.mrf.mxu0
        %v966 = vadd.f32 0.0, %v965
        %967 = vmatmul.f32.gmra.mxu0 %v409
        %v968 = vpop.f32.mrf.mxu0
        %v969 = vadd.f32 0.0, %v968
        %970 = vmatmul.f32.gmra.mxu0 %v411
        %v971 = vpop.f32.mrf.mxu0
        %v972 = vadd.f32 0.0, %v971
        %973 = vmatmul.f32.gmra.mxu0 %v413
        %v974 = vpop.f32.mrf.mxu0
        %v975 = vadd.f32 0.0, %v974
        %976 = vmatmul.f32.gmra.mxu0 %v415
        %v977 = vpop.f32.mrf.mxu0
        %v978 = vadd.f32 0.0, %v977
        %979 = vmatmul.f32.gmra.mxu0 %v417
        %v980 = vpop.f32.mrf.mxu0
        %v981 = vadd.f32 0.0, %v980
        %982 = vmatmul.f32.gmra.mxu0 %v419
        %v983 = vpop.f32.mrf.mxu0
        %v984 = vadd.f32 0.0, %v983
        %985 = vmatmul.f32.gmra.mxu0 %v421
        %v986 = vpop.f32.mrf.mxu0
        %v987 = vadd.f32 0.0, %v986
        %988 = vmatmul.f32.gmra.mxu0 %v423
        %v989 = vpop.f32.mrf.mxu0
        %v990 = vadd.f32 0.0, %v989
        %991 = vmatmul.f32.gmra.mxu0 %v425
        %v992 = vpop.f32.mrf.mxu0
        %v993 = vadd.f32 0.0, %v992
        %994 = vmatmul.f32.gmra.mxu0 %v427
        %v995 = vpop.f32.mrf.mxu0
        %v996 = vadd.f32 0.0, %v995
        %997 = vmatmul.f32.gmra.mxu0 %v657
        %v998 = vpop.f32.mrf.mxu0
        %v999 = vadd.f32 0.0, %v998
        %1000 = vmatmul.f32.gmra.mxu0 %v660
        %v1001 = vpop.f32.mrf.mxu0
        %v1002 = vadd.f32 0.0, %v1001
        %1003 = vmatmul.f32.gmra.mxu0 %v937
        %v1004 = vpop.f32.mrf.mxu0
        %v1005 = vadd.f32 0.0, %v1004
        %1006 = vmatmul.f32.gmra.mxu0 %v940
        %v1007 = vpop.f32.mrf.mxu0
        %v1008 = vadd.f32 0.0, %v1007
        %1009 = vdwg.mxu0
        %v1010 = vadd.f32 %v919, %v963
        %v1011 = vadd.f32 %v920, %v966
        %v1012 = vadd.f32 %v921, %v969
        %v1013 = vadd.f32 %v922, %v972
        %v1014 = vadd.f32 %v923, %v975
        %v1015 = vadd.f32 %v924, %v978
        %v1016 = vadd.f32 %v925, %v981
        %v1017 = vadd.f32 %v926, %v984
        %v1018 = vadd.f32 %v927, %v987
        %v1019 = vadd.f32 %v928, %v990
        %v1020 = vadd.f32 %v929, %v993
        %v1021 = vadd.f32 %v930, %v996
        %v1022 = vadd.f32 %v931, %v999
        %v1023 = vadd.f32 %v932, %v1002
        %v1024 = vadd.f32 %v933, %v1005
        %v1025 = vadd.f32 %v934, %v1008
        %v1027 = vrot.slane %v225, 1
        %v1028 = vrot.slane %v226, 1
        %v1029 = vsel %vm253, %v1027, %v1028
        %v1030 = vrot.slane %v227, 1
        %v1031 = vsel %vm253, %v1028, %v1030
        %v1032 = vld [vmem:[%s1 + $0x1c] sm:$0xf]
        %v1033 = vsel %vm295, %v1029, 0
        %v1035 = vsel %vm295, %v1031, 0
        %v1038 = vsel %vm328, %v1032, 0
        %1040 = vmatpush.msra.mxu0 0.0
        %1041 = vmatpush.msra.mxu0 0.0
        %1042 = vmatpush.msra.mxu0 0.0
        %1043 = vmatpush.msra.mxu0 0.0
        %1044 = vmatpush.msra.mxu0 0.0
        %1045 = vmatpush.msra.mxu0 0.0
        %1046 = vmatpush.msra.mxu0 0.0
        %1047 = vmatpush.msra.mxu0 0.0
        %1048 = vmatpush.msra.mxu0 0.0
        %1049 = vmatpush.msra.mxu0 0.0
        %1050 = vmatpush.msra.mxu0 0.0
        %1051 = vmatpush.msra.mxu0 0.0
        %1052 = vmatpush.msra.mxu0 0.0
        %1053 = vmatpush.msra.mxu0 0.0
        %1054 = vmatpush.msra.mxu0 0.0
        %1055 = vmatpush.msra.mxu0 %v1038
        %1056 = vmatmul.f32.gmra.mxu0 %v304
        %v1057 = vpop.f32.mrf.mxu0
        %v1058 = vadd.f32 0.0, %v1057
        %1059 = vmatmul.f32.gmra.mxu0 %v306
        %v1060 = vpop.f32.mrf.mxu0
        %v1061 = vadd.f32 0.0, %v1060
        %1062 = vmatmul.f32.gmra.mxu0 %v308
        %v1063 = vpop.f32.mrf.mxu0
        %v1064 = vadd.f32 0.0, %v1063
        %1065 = vmatmul.f32.gmra.mxu0 %v310
        %v1066 = vpop.f32.mrf.mxu0
        %v1067 = vadd.f32 0.0, %v1066
        %1068 = vmatmul.f32.gmra.mxu0 %v312
        %v1069 = vpop.f32.mrf.mxu0
        %v1070 = vadd.f32 0.0, %v1069
        %1071 = vmatmul.f32.gmra.mxu0 %v314
        %v1072 = vpop.f32.mrf.mxu0
        %v1073 = vadd.f32 0.0, %v1072
        %1074 = vmatmul.f32.gmra.mxu0 %v316
        %v1075 = vpop.f32.mrf.mxu0
        %v1076 = vadd.f32 0.0, %v1075
        %1077 = vmatmul.f32.gmra.mxu0 %v318
        %v1078 = vpop.f32.mrf.mxu0
        %v1079 = vadd.f32 0.0, %v1078
        %1080 = vmatmul.f32.gmra.mxu0 %v320
        %v1081 = vpop.f32.mrf.mxu0
        %v1082 = vadd.f32 0.0, %v1081
        %1083 = vmatmul.f32.gmra.mxu0 %v322
        %v1084 = vpop.f32.mrf.mxu0
        %v1085 = vadd.f32 0.0, %v1084
        %1086 = vmatmul.f32.gmra.mxu0 %v324
        %v1087 = vpop.f32.mrf.mxu0
        %v1088 = vadd.f32 0.0, %v1087
        %1089 = vmatmul.f32.gmra.mxu0 %v326
        %v1090 = vpop.f32.mrf.mxu0
        %v1091 = vadd.f32 0.0, %v1090
        %1092 = vmatmul.f32.gmra.mxu0 %v753
        %v1093 = vpop.f32.mrf.mxu0
        %v1094 = vadd.f32 0.0, %v1093
        %1095 = vmatmul.f32.gmra.mxu0 %v755
        %v1096 = vpop.f32.mrf.mxu0
        %v1097 = vadd.f32 0.0, %v1096
        %1098 = vmatmul.f32.gmra.mxu0 %v1033
        %v1099 = vpop.f32.mrf.mxu0
        %v1100 = vadd.f32 0.0, %v1099
        %1101 = vmatmul.f32.gmra.mxu0 %v1035
        %v1102 = vpop.f32.mrf.mxu0
        %v1103 = vadd.f32 0.0, %v1102
        %1104 = vdwg.mxu0
        %v1105 = vadd.f32 %v1010, %v1058
        %v1106 = vadd.f32 %v1011, %v1061
        %v1107 = vadd.f32 %v1012, %v1064
        %v1108 = vadd.f32 %v1013, %v1067
        %v1109 = vadd.f32 %v1014, %v1070
        %v1110 = vadd.f32 %v1015, %v1073
        %v1111 = vadd.f32 %v1016, %v1076
        %v1112 = vadd.f32 %v1017, %v1079
        %v1113 = vadd.f32 %v1018, %v1082
        %v1114 = vadd.f32 %v1019, %v1085
        %v1115 = vadd.f32 %v1020, %v1088
        %v1116 = vadd.f32 %v1021, %v1091
        %v1117 = vadd.f32 %v1022, %v1094
        %v1118 = vadd.f32 %v1023, %v1097
        %v1119 = vadd.f32 %v1024, %v1100
        %v1120 = vadd.f32 %v1025, %v1103
        %v1121 = vrot.slane %v225, 2
        %v1122 = vrot.slane %v226, 2
        %v1123 = vsel %vm497, %v1121, %v1122
        %v1124 = vrot.slane %v227, 2
        %v1125 = vsel %vm497, %v1122, %v1124
        %v1126 = vld [vmem:[%s1 + $0x20] sm:$0xf]
        %v1127 = vsel %vm295, %v1123, 0
        %v1129 = vsel %vm295, %v1125, 0
        %v1132 = vsel %vm328, %v1126, 0
        %1134 = vmatpush.msra.mxu0 0.0
        %1135 = vmatpush.msra.mxu0 0.0
        %1136 = vmatpush.msra.mxu0 0.0
        %1137 = vmatpush.msra.mxu0 0.0
        %1138 = vmatpush.msra.mxu0 0.0
        %1139 = vmatpush.msra.mxu0 0.0
        %1140 = vmatpush.msra.mxu0 0.0
        %1141 = vmatpush.msra.mxu0 0.0
        %1142 = vmatpush.msra.mxu0 0.0
        %1143 = vmatpush.msra.mxu0 0.0
        %1144 = vmatpush.msra.mxu0 0.0
        %1145 = vmatpush.msra.mxu0 0.0
        %1146 = vmatpush.msra.mxu0 0.0
        %1147 = vmatpush.msra.mxu0 0.0
        %1148 = vmatpush.msra.mxu0 0.0
        %1149 = vmatpush.msra.mxu0 %v1132
        %1150 = vmatmul.f32.gmra.mxu0 %v547
        %v1151 = vpop.f32.mrf.mxu0
        %v1152 = vadd.f32 0.0, %v1151
        %1153 = vmatmul.f32.gmra.mxu0 %v549
        %v1154 = vpop.f32.mrf.mxu0
        %v1155 = vadd.f32 0.0, %v1154
        %1156 = vmatmul.f32.gmra.mxu0 %v551
        %v1157 = vpop.f32.mrf.mxu0
        %v1158 = vadd.f32 0.0, %v1157
        %1159 = vmatmul.f32.gmra.mxu0 %v553
        %v1160 = vpop.f32.mrf.mxu0
        %v1161 = vadd.f32 0.0, %v1160
        %1162 = vmatmul.f32.gmra.mxu0 %v555
        %v1163 = vpop.f32.mrf.mxu0
        %v1164 = vadd.f32 0.0, %v1163
        %1165 = vmatmul.f32.gmra.mxu0 %v557
        %v1166 = vpop.f32.mrf.mxu0
        %v1167 = vadd.f32 0.0, %v1166
        %1168 = vmatmul.f32.gmra.mxu0 %v559
        %v1169 = vpop.f32.mrf.mxu0
        %v1170 = vadd.f32 0.0, %v1169
        %1171 = vmatmul.f32.gmra.mxu0 %v561
        %v1172 = vpop.f32.mrf.mxu0
        %v1173 = vadd.f32 0.0, %v1172
        %1174 = vmatmul.f32.gmra.mxu0 %v563
        %v1175 = vpop.f32.mrf.mxu0
        %v1176 = vadd.f32 0.0, %v1175
        %1177 = vmatmul.f32.gmra.mxu0 %v565
        %v1178 = vpop.f32.mrf.mxu0
        %v1179 = vadd.f32 0.0, %v1178
        %1180 = vmatmul.f32.gmra.mxu0 %v567
        %v1181 = vpop.f32.mrf.mxu0
        %v1182 = vadd.f32 0.0, %v1181
        %1183 = vmatmul.f32.gmra.mxu0 %v569
        %v1184 = vpop.f32.mrf.mxu0
        %v1185 = vadd.f32 0.0, %v1184
        %1186 = vmatmul.f32.gmra.mxu0 %v847
        %v1187 = vpop.f32.mrf.mxu0
        %v1188 = vadd.f32 0.0, %v1187
        %1189 = vmatmul.f32.gmra.mxu0 %v849
        %v1190 = vpop.f32.mrf.mxu0
        %v1191 = vadd.f32 0.0, %v1190
        %1192 = vmatmul.f32.gmra.mxu0 %v1127
        %v1193 = vpop.f32.mrf.mxu0
        %v1194 = vadd.f32 0.0, %v1193
        %1195 = vmatmul.f32.gmra.mxu0 %v1129
        %v1196 = vpop.f32.mrf.mxu0
        %v1197 = vadd.f32 0.0, %v1196
        %1198 = vdwg.mxu0
        %v1199 = vadd.f32 %v1105, %v1152
        %v1200 = vadd.f32 %v1106, %v1155
        %v1201 = vadd.f32 %v1107, %v1158
        %v1202 = vadd.f32 %v1108, %v1161
        %v1203 = vadd.f32 %v1109, %v1164
        %v1204 = vadd.f32 %v1110, %v1167
        %v1205 = vadd.f32 %v1111, %v1170
        %v1206 = vadd.f32 %v1112, %v1173
        %v1207 = vadd.f32 %v1113, %v1176
        %v1208 = vadd.f32 %v1114, %v1179
        %v1209 = vadd.f32 %v1115, %v1182
        %v1210 = vadd.f32 %v1116, %v1185
        %v1211 = vadd.f32 %v1117, %v1188
        %v1212 = vadd.f32 %v1118, %v1191
        %v1213 = vadd.f32 %v1119, %v1194
        %v1214 = vadd.f32 %v1120, %v1197
        %v1215 = vld [vmem:[%s2] sm:$0x1]
        %v1217 = vperm.slane %v1215, 0
        %v1219 = vadd.f32 %v1199, %v1217
        %v1220 = vadd.f32 %v1200, %v1217
        %v1221 = vadd.f32 %v1201, %v1217
        %v1222 = vadd.f32 %v1202, %v1217
        %v1223 = vadd.f32 %v1203, %v1217
        %v1224 = vadd.f32 %v1204, %v1217
        %v1225 = vadd.f32 %v1205, %v1217
        %v1226 = vadd.f32 %v1206, %v1217
        %v1227 = vadd.f32 %v1207, %v1217
        %v1228 = vadd.f32 %v1208, %v1217
        %v1229 = vadd.f32 %v1209, %v1217
        %v1230 = vadd.f32 %v1210, %v1217
        %v1231 = vadd.f32 %v1211, %v1217
        %v1232 = vadd.f32 %v1212, %v1217
        %v1233 = vadd.f32 %v1213, %v1217
        %v1234 = vadd.f32 %v1214, %v1217
        %v1235 = vmul.f32 %v1219, %v1219
        %v1236 = vmul.f32 %v1220, %v1220
        %v1237 = vmul.f32 %v1221, %v1221
        %v1238 = vmul.f32 %v1222, %v1222
        %v1239 = vmul.f32 %v1223, %v1223
        %v1240 = vmul.f32 %v1224, %v1224
        %v1241 = vmul.f32 %v1225, %v1225
        %v1242 = vmul.f32 %v1226, %v1226
        %v1243 = vmul.f32 %v1227, %v1227
        %v1244 = vmul.f32 %v1228, %v1228
        %v1245 = vmul.f32 %v1229, %v1229
        %v1246 = vmul.f32 %v1230, %v1230
        %v1247 = vmul.f32 %v1231, %v1231
        %v1248 = vmul.f32 %v1232, %v1232
        %v1249 = vmul.f32 %v1233, %v1233
        %v1250 = vmul.f32 %v1234, %v1234
        %1267 = vrot.lane.b32.xlu0 %v1235, 1
        %v1268 = vpop.permute.xlu0 %1267
        %1269 = vrot.lane.b32.xlu0 %v1236, 1
        %v1270 = vpop.permute.xlu0 %1269
        %1271 = vrot.lane.b32.xlu0 %v1237, 1
        %v1272 = vpop.permute.xlu0 %1271
        %1273 = vrot.lane.b32.xlu0 %v1238, 1
        %v1274 = vpop.permute.xlu0 %1273
        %1275 = vrot.lane.b32.xlu0 %v1239, 1
        %v1276 = vpop.permute.xlu0 %1275
        %1277 = vrot.lane.b32.xlu0 %v1240, 1
        %v1278 = vpop.permute.xlu0 %1277
        %1279 = vrot.lane.b32.xlu0 %v1241, 1
        %v1280 = vpop.permute.xlu0 %1279
        %1281 = vrot.lane.b32.xlu0 %v1242, 1
        %v1282 = vpop.permute.xlu0 %1281
        %1283 = vrot.lane.b32.xlu0 %v1243, 1
        %v1284 = vpop.permute.xlu0 %1283
        %1285 = vrot.lane.b32.xlu0 %v1244, 1
        %v1286 = vpop.permute.xlu0 %1285
        %1287 = vrot.lane.b32.xlu0 %v1245, 1
        %v1288 = vpop.permute.xlu0 %1287
        %1289 = vrot.lane.b32.xlu0 %v1246, 1
        %v1290 = vpop.permute.xlu0 %1289
        %1291 = vrot.lane.b32.xlu0 %v1247, 1
        %v1292 = vpop.permute.xlu0 %1291
        %1293 = vrot.lane.b32.xlu0 %v1248, 1
        %v1294 = vpop.permute.xlu0 %1293
        %1295 = vrot.lane.b32.xlu0 %v1249, 1
        %v1296 = vpop.permute.xlu0 %1295
        %1297 = vrot.lane.b32.xlu0 %v1250, 1
        %v1298 = vpop.permute.xlu0 %1297
        %v1315 = vadd.f32 %v1235, %v1268
        %v1316 = vadd.f32 %v1236, %v1270
        %v1317 = vadd.f32 %v1237, %v1272
        %v1318 = vadd.f32 %v1238, %v1274
        %v1319 = vadd.f32 %v1239, %v1276
        %v1320 = vadd.f32 %v1240, %v1278
        %v1321 = vadd.f32 %v1241, %v1280
        %v1322 = vadd.f32 %v1242, %v1282
        %v1323 = vadd.f32 %v1243, %v1284
        %v1324 = vadd.f32 %v1244, %v1286
        %v1325 = vadd.f32 %v1245, %v1288
        %v1326 = vadd.f32 %v1246, %v1290
        %v1327 = vadd.f32 %v1247, %v1292
        %v1328 = vadd.f32 %v1248, %v1294
        %v1329 = vadd.f32 %v1249, %v1296
        %v1330 = vadd.f32 %v1250, %v1298
        %1331 = vrot.lane.b32.xlu0 %v1235, 127
        %v1332 = vpop.permute.xlu0 %1331
        %1333 = vrot.lane.b32.xlu0 %v1236, 127
        %v1334 = vpop.permute.xlu0 %1333
        %1335 = vrot.lane.b32.xlu0 %v1237, 127
        %v1336 = vpop.permute.xlu0 %1335
        %1337 = vrot.lane.b32.xlu0 %v1238, 127
        %v1338 = vpop.permute.xlu0 %1337
        %1339 = vrot.lane.b32.xlu0 %v1239, 127
        %v1340 = vpop.permute.xlu0 %1339
        %1341 = vrot.lane.b32.xlu0 %v1240, 127
        %v1342 = vpop.permute.xlu0 %1341
        %1343 = vrot.lane.b32.xlu0 %v1241, 127
        %v1344 = vpop.permute.xlu0 %1343
        %1345 = vrot.lane.b32.xlu0 %v1242, 127
        %v1346 = vpop.permute.xlu0 %1345
        %1347 = vrot.lane.b32.xlu0 %v1243, 127
        %v1348 = vpop.permute.xlu0 %1347
        %1349 = vrot.lane.b32.xlu0 %v1244, 127
        %v1350 = vpop.permute.xlu0 %1349
        %1351 = vrot.lane.b32.xlu0 %v1245, 127
        %v1352 = vpop.permute.xlu0 %1351
        %1353 = vrot.lane.b32.xlu0 %v1246, 127
        %v1354 = vpop.permute.xlu0 %1353
        %1355 = vrot.lane.b32.xlu0 %v1247, 127
        %v1356 = vpop.permute.xlu0 %1355
        %1357 = vrot.lane.b32.xlu0 %v1248, 127
        %v1358 = vpop.permute.xlu0 %1357
        %1359 = vrot.lane.b32.xlu0 %v1249, 127
        %v1360 = vpop.permute.xlu0 %1359
        %1361 = vrot.lane.b32.xlu0 %v1250, 127
        %v1362 = vpop.permute.xlu0 %1361
        %v1379 = vadd.f32 %v1315, %v1332
        %v1380 = vadd.f32 %v1316, %v1334
        %v1381 = vadd.f32 %v1317, %v1336
        %v1382 = vadd.f32 %v1318, %v1338
        %v1383 = vadd.f32 %v1319, %v1340
        %v1384 = vadd.f32 %v1320, %v1342
        %v1385 = vadd.f32 %v1321, %v1344
        %v1386 = vadd.f32 %v1322, %v1346
        %v1387 = vadd.f32 %v1323, %v1348
        %v1388 = vadd.f32 %v1324, %v1350
        %v1389 = vadd.f32 %v1325, %v1352
        %v1390 = vadd.f32 %v1326, %v1354
        %v1391 = vadd.f32 %v1327, %v1356
        %v1392 = vadd.f32 %v1328, %v1358
        %v1393 = vadd.f32 %v1329, %v1360
        %v1394 = vadd.f32 %v1330, %v1362
        %1395 = vrot.lane.b32.xlu0 %v1235, 2
        %v1396 = vpop.permute.xlu0 %1395
        %1397 = vrot.lane.b32.xlu0 %v1236, 2
        %v1398 = vpop.permute.xlu0 %1397
        %1399 = vrot.lane.b32.xlu0 %v1237, 2
        %v1400 = vpop.permute.xlu0 %1399
        %1401 = vrot.lane.b32.xlu0 %v1238, 2
        %v1402 = vpop.permute.xlu0 %1401
        %1403 = vrot.lane.b32.xlu0 %v1239, 2
        %v1404 = vpop.permute.xlu0 %1403
        %1405 = vrot.lane.b32.xlu0 %v1240, 2
        %v1406 = vpop.permute.xlu0 %1405
        %1407 = vrot.lane.b32.xlu0 %v1241, 2
        %v1408 = vpop.permute.xlu0 %1407
        %1409 = vrot.lane.b32.xlu0 %v1242, 2
        %v1410 = vpop.permute.xlu0 %1409
        %1411 = vrot.lane.b32.xlu0 %v1243, 2
        %v1412 = vpop.permute.xlu0 %1411
        %1413 = vrot.lane.b32.xlu0 %v1244, 2
        %v1414 = vpop.permute.xlu0 %1413
        %1415 = vrot.lane.b32.xlu0 %v1245, 2
        %v1416 = vpop.permute.xlu0 %1415
        %1417 = vrot.lane.b32.xlu0 %v1246, 2
        %v1418 = vpop.permute.xlu0 %1417
        %1419 = vrot.lane.b32.xlu0 %v1247, 2
        %v1420 = vpop.permute.xlu0 %1419
        %1421 = vrot.lane.b32.xlu0 %v1248, 2
        %v1422 = vpop.permute.xlu0 %1421
        %1423 = vrot.lane.b32.xlu0 %v1249, 2
        %v1424 = vpop.permute.xlu0 %1423
        %1425 = vrot.lane.b32.xlu0 %v1250, 2
        %v1426 = vpop.permute.xlu0 %1425
        %v1443 = vadd.f32 %v1379, %v1396
        %v1444 = vadd.f32 %v1380, %v1398
        %v1445 = vadd.f32 %v1381, %v1400
        %v1446 = vadd.f32 %v1382, %v1402
        %v1447 = vadd.f32 %v1383, %v1404
        %v1448 = vadd.f32 %v1384, %v1406
        %v1449 = vadd.f32 %v1385, %v1408
        %v1450 = vadd.f32 %v1386, %v1410
        %v1451 = vadd.f32 %v1387, %v1412
        %v1452 = vadd.f32 %v1388, %v1414
        %v1453 = vadd.f32 %v1389, %v1416
        %v1454 = vadd.f32 %v1390, %v1418
        %v1455 = vadd.f32 %v1391, %v1420
        %v1456 = vadd.f32 %v1392, %v1422
        %v1457 = vadd.f32 %v1393, %v1424
        %v1458 = vadd.f32 %v1394, %v1426
        %1459 = vrot.lane.b32.xlu0 %v1235, 126
        %v1460 = vpop.permute.xlu0 %1459
        %1461 = vrot.lane.b32.xlu0 %v1236, 126
        %v1462 = vpop.permute.xlu0 %1461
        %1463 = vrot.lane.b32.xlu0 %v1237, 126
        %v1464 = vpop.permute.xlu0 %1463
        %1465 = vrot.lane.b32.xlu0 %v1238, 126
        %v1466 = vpop.permute.xlu0 %1465
        %1467 = vrot.lane.b32.xlu0 %v1239, 126
        %v1468 = vpop.permute.xlu0 %1467
        %1469 = vrot.lane.b32.xlu0 %v1240, 126
        %v1470 = vpop.permute.xlu0 %1469
        %1471 = vrot.lane.b32.xlu0 %v1241, 126
        %v1472 = vpop.permute.xlu0 %1471
        %1473 = vrot.lane.b32.xlu0 %v1242, 126
        %v1474 = vpop.permute.xlu0 %1473
        %1475 = vrot.lane.b32.xlu0 %v1243, 126
        %v1476 = vpop.permute.xlu0 %1475
        %1477 = vrot.lane.b32.xlu0 %v1244, 126
        %v1478 = vpop.permute.xlu0 %1477
        %1479 = vrot.lane.b32.xlu0 %v1245, 126
        %v1480 = vpop.permute.xlu0 %1479
        %1481 = vrot.lane.b32.xlu0 %v1246, 126
        %v1482 = vpop.permute.xlu0 %1481
        %1483 = vrot.lane.b32.xlu0 %v1247, 126
        %v1484 = vpop.permute.xlu0 %1483
        %1485 = vrot.lane.b32.xlu0 %v1248, 126
        %v1486 = vpop.permute.xlu0 %1485
        %1487 = vrot.lane.b32.xlu0 %v1249, 126
        %v1488 = vpop.permute.xlu0 %1487
        %1489 = vrot.lane.b32.xlu0 %v1250, 126
        %v1490 = vpop.permute.xlu0 %1489
        %v1507 = vadd.f32 %v1443, %v1460
        %v1508 = vadd.f32 %v1444, %v1462
        %v1509 = vadd.f32 %v1445, %v1464
        %v1510 = vadd.f32 %v1446, %v1466
        %v1511 = vadd.f32 %v1447, %v1468
        %v1512 = vadd.f32 %v1448, %v1470
        %v1513 = vadd.f32 %v1449, %v1472
        %v1514 = vadd.f32 %v1450, %v1474
        %v1515 = vadd.f32 %v1451, %v1476
        %v1516 = vadd.f32 %v1452, %v1478
        %v1517 = vadd.f32 %v1453, %v1480
        %v1518 = vadd.f32 %v1454, %v1482
        %v1519 = vadd.f32 %v1455, %v1484
        %v1520 = vadd.f32 %v1456, %v1486
        %v1521 = vadd.f32 %v1457, %v1488
        %v1522 = vadd.f32 %v1458, %v1490
        %v1523 = vmul.f32 %v1507, 2e-05
        %v1524 = vmul.f32 %v1508, 2e-05
        %v1525 = vmul.f32 %v1509, 2e-05
        %v1526 = vmul.f32 %v1510, 2e-05
        %v1527 = vmul.f32 %v1511, 2e-05
        %v1528 = vmul.f32 %v1512, 2e-05
        %v1529 = vmul.f32 %v1513, 2e-05
        %v1530 = vmul.f32 %v1514, 2e-05
        %v1531 = vmul.f32 %v1515, 2e-05
        %v1532 = vmul.f32 %v1516, 2e-05
        %v1533 = vmul.f32 %v1517, 2e-05
        %v1534 = vmul.f32 %v1518, 2e-05
        %v1535 = vmul.f32 %v1519, 2e-05
        %v1536 = vmul.f32 %v1520, 2e-05
        %v1537 = vmul.f32 %v1521, 2e-05
        %v1538 = vmul.f32 %v1522, 2e-05
        %v1539 = vadd.f32 %v1523, 1.0
        %v1540 = vadd.f32 %v1524, 1.0
        %v1541 = vadd.f32 %v1525, 1.0
        %v1542 = vadd.f32 %v1526, 1.0
        %v1543 = vadd.f32 %v1527, 1.0
        %v1544 = vadd.f32 %v1528, 1.0
        %v1545 = vadd.f32 %v1529, 1.0
        %v1546 = vadd.f32 %v1530, 1.0
        %v1547 = vadd.f32 %v1531, 1.0
        %v1548 = vadd.f32 %v1532, 1.0
        %v1549 = vadd.f32 %v1533, 1.0
        %v1550 = vadd.f32 %v1534, 1.0
        %v1551 = vadd.f32 %v1535, 1.0
        %v1552 = vadd.f32 %v1536, 1.0
        %v1553 = vadd.f32 %v1537, 1.0
        %v1554 = vadd.f32 %v1538, 1.0
        %v1555 = vrsqrt.pop %v1539
        %v1556 = vmul.f32 %v1555, %v1539
        %v1557 = vmul.f32 %v1556, %v1555
        %v1558 = vmul.f32 0.5, %v1557
        %v1559 = vsub.f32 1.5, %v1558
        %v1560 = vmul.f32 %v1555, %v1559
        %vm1561 = vweird.f32 %v1539
        %vm1562 = vweird.f32 %v1555
        %vm1563 = vmor %vm1561, %vm1562
        %v1564 = vsel %vm1563, %v1555, %v1560
        %v1565 = vrsqrt.pop %v1540
        %v1566 = vmul.f32 %v1565, %v1540
        %v1567 = vmul.f32 %v1566, %v1565
        %v1568 = vmul.f32 0.5, %v1567
        %v1569 = vsub.f32 1.5, %v1568
        %v1570 = vmul.f32 %v1565, %v1569
        %vm1571 = vweird.f32 %v1540
        %vm1572 = vweird.f32 %v1565
        %vm1573 = vmor %vm1571, %vm1572
        %v1574 = vsel %vm1573, %v1565, %v1570
        %v1575 = vrsqrt.pop %v1541
        %v1576 = vmul.f32 %v1575, %v1541
        %v1577 = vmul.f32 %v1576, %v1575
        %v1578 = vmul.f32 0.5, %v1577
        %v1579 = vsub.f32 1.5, %v1578
        %v1580 = vmul.f32 %v1575, %v1579
        %vm1581 = vweird.f32 %v1541
        %vm1582 = vweird.f32 %v1575
        %vm1583 = vmor %vm1581, %vm1582
        %v1584 = vsel %vm1583, %v1575, %v1580
        %v1585 = vrsqrt.pop %v1542
        %v1586 = vmul.f32 %v1585, %v1542
        %v1587 = vmul.f32 %v1586, %v1585
        %v1588 = vmul.f32 0.5, %v1587
        %v1589 = vsub.f32 1.5, %v1588
        %v1590 = vmul.f32 %v1585, %v1589
        %vm1591 = vweird.f32 %v1542
        %vm1592 = vweird.f32 %v1585
        %vm1593 = vmor %vm1591, %vm1592
        %v1594 = vsel %vm1593, %v1585, %v1590
        %v1595 = vrsqrt.pop %v1543
        %v1596 = vmul.f32 %v1595, %v1543
        %v1597 = vmul.f32 %v1596, %v1595
        %v1598 = vmul.f32 0.5, %v1597
        %v1599 = vsub.f32 1.5, %v1598
        %v1600 = vmul.f32 %v1595, %v1599
        %vm1601 = vweird.f32 %v1543
        %vm1602 = vweird.f32 %v1595
        %vm1603 = vmor %vm1601, %vm1602
        %v1604 = vsel %vm1603, %v1595, %v1600
        %v1605 = vrsqrt.pop %v1544
        %v1606 = vmul.f32 %v1605, %v1544
        %v1607 = vmul.f32 %v1606, %v1605
        %v1608 = vmul.f32 0.5, %v1607
        %v1609 = vsub.f32 1.5, %v1608
        %v1610 = vmul.f32 %v1605, %v1609
        %vm1611 = vweird.f32 %v1544
        %vm1612 = vweird.f32 %v1605
        %vm1613 = vmor %vm1611, %vm1612
        %v1614 = vsel %vm1613, %v1605, %v1610
        %v1615 = vrsqrt.pop %v1545
        %v1616 = vmul.f32 %v1615, %v1545
        %v1617 = vmul.f32 %v1616, %v1615
        %v1618 = vmul.f32 0.5, %v1617
        %v1619 = vsub.f32 1.5, %v1618
        %v1620 = vmul.f32 %v1615, %v1619
        %vm1621 = vweird.f32 %v1545
        %vm1622 = vweird.f32 %v1615
        %vm1623 = vmor %vm1621, %vm1622
        %v1624 = vsel %vm1623, %v1615, %v1620
        %v1625 = vrsqrt.pop %v1546
        %v1626 = vmul.f32 %v1625, %v1546
        %v1627 = vmul.f32 %v1626, %v1625
        %v1628 = vmul.f32 0.5, %v1627
        %v1629 = vsub.f32 1.5, %v1628
        %v1630 = vmul.f32 %v1625, %v1629
        %vm1631 = vweird.f32 %v1546
        %vm1632 = vweird.f32 %v1625
        %vm1633 = vmor %vm1631, %vm1632
        %v1634 = vsel %vm1633, %v1625, %v1630
        %v1635 = vrsqrt.pop %v1547
        %v1636 = vmul.f32 %v1635, %v1547
        %v1637 = vmul.f32 %v1636, %v1635
        %v1638 = vmul.f32 0.5, %v1637
        %v1639 = vsub.f32 1.5, %v1638
        %v1640 = vmul.f32 %v1635, %v1639
        %vm1641 = vweird.f32 %v1547
        %vm1642 = vweird.f32 %v1635
        %vm1643 = vmor %vm1641, %vm1642
        %v1644 = vsel %vm1643, %v1635, %v1640
        %v1645 = vrsqrt.pop %v1548
        %v1646 = vmul.f32 %v1645, %v1548
        %v1647 = vmul.f32 %v1646, %v1645
        %v1648 = vmul.f32 0.5, %v1647
        %v1649 = vsub.f32 1.5, %v1648
        %v1650 = vmul.f32 %v1645, %v1649
        %vm1651 = vweird.f32 %v1548
        %vm1652 = vweird.f32 %v1645
        %vm1653 = vmor %vm1651, %vm1652
        %v1654 = vsel %vm1653, %v1645, %v1650
        %v1655 = vrsqrt.pop %v1549
        %v1656 = vmul.f32 %v1655, %v1549
        %v1657 = vmul.f32 %v1656, %v1655
        %v1658 = vmul.f32 0.5, %v1657
        %v1659 = vsub.f32 1.5, %v1658
        %v1660 = vmul.f32 %v1655, %v1659
        %vm1661 = vweird.f32 %v1549
        %vm1662 = vweird.f32 %v1655
        %vm1663 = vmor %vm1661, %vm1662
        %v1664 = vsel %vm1663, %v1655, %v1660
        %v1665 = vrsqrt.pop %v1550
        %v1666 = vmul.f32 %v1665, %v1550
        %v1667 = vmul.f32 %v1666, %v1665
        %v1668 = vmul.f32 0.5, %v1667
        %v1669 = vsub.f32 1.5, %v1668
        %v1670 = vmul.f32 %v1665, %v1669
        %vm1671 = vweird.f32 %v1550
        %vm1672 = vweird.f32 %v1665
        %vm1673 = vmor %vm1671, %vm1672
        %v1674 = vsel %vm1673, %v1665, %v1670
        %v1675 = vrsqrt.pop %v1551
        %v1676 = vmul.f32 %v1675, %v1551
        %v1677 = vmul.f32 %v1676, %v1675
        %v1678 = vmul.f32 0.5, %v1677
        %v1679 = vsub.f32 1.5, %v1678
        %v1680 = vmul.f32 %v1675, %v1679
        %vm1681 = vweird.f32 %v1551
        %vm1682 = vweird.f32 %v1675
        %vm1683 = vmor %vm1681, %vm1682
        %v1684 = vsel %vm1683, %v1675, %v1680
        %v1685 = vrsqrt.pop %v1552
        %v1686 = vmul.f32 %v1685, %v1552
        %v1687 = vmul.f32 %v1686, %v1685
        %v1688 = vmul.f32 0.5, %v1687
        %v1689 = vsub.f32 1.5, %v1688
        %v1690 = vmul.f32 %v1685, %v1689
        %vm1691 = vweird.f32 %v1552
        %vm1692 = vweird.f32 %v1685
        %vm1693 = vmor %vm1691, %vm1692
        %v1694 = vsel %vm1693, %v1685, %v1690
        %v1695 = vrsqrt.pop %v1553
        %v1696 = vmul.f32 %v1695, %v1553
        %v1697 = vmul.f32 %v1696, %v1695
        %v1698 = vmul.f32 0.5, %v1697
        %v1699 = vsub.f32 1.5, %v1698
        %v1700 = vmul.f32 %v1695, %v1699
        %vm1701 = vweird.f32 %v1553
        %vm1702 = vweird.f32 %v1695
        %vm1703 = vmor %vm1701, %vm1702
        %v1704 = vsel %vm1703, %v1695, %v1700
        %v1705 = vrsqrt.pop %v1554
        %v1706 = vmul.f32 %v1705, %v1554
        %v1707 = vmul.f32 %v1706, %v1705
        %v1708 = vmul.f32 0.5, %v1707
        %v1709 = vsub.f32 1.5, %v1708
        %v1710 = vmul.f32 %v1705, %v1709
        %vm1711 = vweird.f32 %v1554
        %vm1712 = vweird.f32 %v1705
        %vm1713 = vmor %vm1711, %vm1712
        %v1714 = vsel %vm1713, %v1705, %v1710
        %v1715 = vrsqrt.pop %v1564
        %v1716 = vmul.f32 %v1715, %v1564
        %v1717 = vmul.f32 %v1716, %v1715
        %v1718 = vmul.f32 0.5, %v1717
        %v1719 = vsub.f32 1.5, %v1718
        %v1720 = vmul.f32 %v1715, %v1719
        %v1721 = vmul.f32 %v1564, %v1720
        %vm1722 = vcmp.eq.f32.partialorder %v1564, inf
        %v1723 = vsel %vm1722, %v1564, %v1721
        %vm1724 = vcmp.eq.f32.partialorder %v1564, 0.0
        %v1725 = vand.u32 %v1564, 2147483648
        %v1726 = vsel %vm1724, %v1725, %v1723
        %v1727 = vrsqrt.pop %v1574
        %v1728 = vmul.f32 %v1727, %v1574
        %v1729 = vmul.f32 %v1728, %v1727
        %v1730 = vmul.f32 0.5, %v1729
        %v1731 = vsub.f32 1.5, %v1730
        %v1732 = vmul.f32 %v1727, %v1731
        %v1733 = vmul.f32 %v1574, %v1732
        %vm1734 = vcmp.eq.f32.partialorder %v1574, inf
        %v1735 = vsel %vm1734, %v1574, %v1733
        %vm1736 = vcmp.eq.f32.partialorder %v1574, 0.0
        %v1737 = vand.u32 %v1574, 2147483648
        %v1738 = vsel %vm1736, %v1737, %v1735
        %v1739 = vrsqrt.pop %v1584
        %v1740 = vmul.f32 %v1739, %v1584
        %v1741 = vmul.f32 %v1740, %v1739
        %v1742 = vmul.f32 0.5, %v1741
        %v1743 = vsub.f32 1.5, %v1742
        %v1744 = vmul.f32 %v1739, %v1743
        %v1745 = vmul.f32 %v1584, %v1744
        %vm1746 = vcmp.eq.f32.partialorder %v1584, inf
        %v1747 = vsel %vm1746, %v1584, %v1745
        %vm1748 = vcmp.eq.f32.partialorder %v1584, 0.0
        %v1749 = vand.u32 %v1584, 2147483648
        %v1750 = vsel %vm1748, %v1749, %v1747
        %v1751 = vrsqrt.pop %v1594
        %v1752 = vmul.f32 %v1751, %v1594
        %v1753 = vmul.f32 %v1752, %v1751
        %v1754 = vmul.f32 0.5, %v1753
        %v1755 = vsub.f32 1.5, %v1754
        %v1756 = vmul.f32 %v1751, %v1755
        %v1757 = vmul.f32 %v1594, %v1756
        %vm1758 = vcmp.eq.f32.partialorder %v1594, inf
        %v1759 = vsel %vm1758, %v1594, %v1757
        %vm1760 = vcmp.eq.f32.partialorder %v1594, 0.0
        %v1761 = vand.u32 %v1594, 2147483648
        %v1762 = vsel %vm1760, %v1761, %v1759
        %v1763 = vrsqrt.pop %v1604
        %v1764 = vmul.f32 %v1763, %v1604
        %v1765 = vmul.f32 %v1764, %v1763
        %v1766 = vmul.f32 0.5, %v1765
        %v1767 = vsub.f32 1.5, %v1766
        %v1768 = vmul.f32 %v1763, %v1767
        %v1769 = vmul.f32 %v1604, %v1768
        %vm1770 = vcmp.eq.f32.partialorder %v1604, inf
        %v1771 = vsel %vm1770, %v1604, %v1769
        %vm1772 = vcmp.eq.f32.partialorder %v1604, 0.0
        %v1773 = vand.u32 %v1604, 2147483648
        %v1774 = vsel %vm1772, %v1773, %v1771
        %v1775 = vrsqrt.pop %v1614
        %v1776 = vmul.f32 %v1775, %v1614
        %v1777 = vmul.f32 %v1776, %v1775
        %v1778 = vmul.f32 0.5, %v1777
        %v1779 = vsub.f32 1.5, %v1778
        %v1780 = vmul.f32 %v1775, %v1779
        %v1781 = vmul.f32 %v1614, %v1780
        %vm1782 = vcmp.eq.f32.partialorder %v1614, inf
        %v1783 = vsel %vm1782, %v1614, %v1781
        %vm1784 = vcmp.eq.f32.partialorder %v1614, 0.0
        %v1785 = vand.u32 %v1614, 2147483648
        %v1786 = vsel %vm1784, %v1785, %v1783
        %v1787 = vrsqrt.pop %v1624
        %v1788 = vmul.f32 %v1787, %v1624
        %v1789 = vmul.f32 %v1788, %v1787
        %v1790 = vmul.f32 0.5, %v1789
        %v1791 = vsub.f32 1.5, %v1790
        %v1792 = vmul.f32 %v1787, %v1791
        %v1793 = vmul.f32 %v1624, %v1792
        %vm1794 = vcmp.eq.f32.partialorder %v1624, inf
        %v1795 = vsel %vm1794, %v1624, %v1793
        %vm1796 = vcmp.eq.f32.partialorder %v1624, 0.0
        %v1797 = vand.u32 %v1624, 2147483648
        %v1798 = vsel %vm1796, %v1797, %v1795
        %v1799 = vrsqrt.pop %v1634
        %v1800 = vmul.f32 %v1799, %v1634
        %v1801 = vmul.f32 %v1800, %v1799
        %v1802 = vmul.f32 0.5, %v1801
        %v1803 = vsub.f32 1.5, %v1802
        %v1804 = vmul.f32 %v1799, %v1803
        %v1805 = vmul.f32 %v1634, %v1804
        %vm1806 = vcmp.eq.f32.partialorder %v1634, inf
        %v1807 = vsel %vm1806, %v1634, %v1805
        %vm1808 = vcmp.eq.f32.partialorder %v1634, 0.0
        %v1809 = vand.u32 %v1634, 2147483648
        %v1810 = vsel %vm1808, %v1809, %v1807
        %v1811 = vrsqrt.pop %v1644
        %v1812 = vmul.f32 %v1811, %v1644
        %v1813 = vmul.f32 %v1812, %v1811
        %v1814 = vmul.f32 0.5, %v1813
        %v1815 = vsub.f32 1.5, %v1814
        %v1816 = vmul.f32 %v1811, %v1815
        %v1817 = vmul.f32 %v1644, %v1816
        %vm1818 = vcmp.eq.f32.partialorder %v1644, inf
        %v1819 = vsel %vm1818, %v1644, %v1817
        %vm1820 = vcmp.eq.f32.partialorder %v1644, 0.0
        %v1821 = vand.u32 %v1644, 2147483648
        %v1822 = vsel %vm1820, %v1821, %v1819
        %v1823 = vrsqrt.pop %v1654
        %v1824 = vmul.f32 %v1823, %v1654
        %v1825 = vmul.f32 %v1824, %v1823
        %v1826 = vmul.f32 0.5, %v1825
        %v1827 = vsub.f32 1.5, %v1826
        %v1828 = vmul.f32 %v1823, %v1827
        %v1829 = vmul.f32 %v1654, %v1828
        %vm1830 = vcmp.eq.f32.partialorder %v1654, inf
        %v1831 = vsel %vm1830, %v1654, %v1829
        %vm1832 = vcmp.eq.f32.partialorder %v1654, 0.0
        %v1833 = vand.u32 %v1654, 2147483648
        %v1834 = vsel %vm1832, %v1833, %v1831
        %v1835 = vrsqrt.pop %v1664
        %v1836 = vmul.f32 %v1835, %v1664
        %v1837 = vmul.f32 %v1836, %v1835
        %v1838 = vmul.f32 0.5, %v1837
        %v1839 = vsub.f32 1.5, %v1838
        %v1840 = vmul.f32 %v1835, %v1839
        %v1841 = vmul.f32 %v1664, %v1840
        %vm1842 = vcmp.eq.f32.partialorder %v1664, inf
        %v1843 = vsel %vm1842, %v1664, %v1841
        %vm1844 = vcmp.eq.f32.partialorder %v1664, 0.0
        %v1845 = vand.u32 %v1664, 2147483648
        %v1846 = vsel %vm1844, %v1845, %v1843
        %v1847 = vrsqrt.pop %v1674
        %v1848 = vmul.f32 %v1847, %v1674
        %v1849 = vmul.f32 %v1848, %v1847
        %v1850 = vmul.f32 0.5, %v1849
        %v1851 = vsub.f32 1.5, %v1850
        %v1852 = vmul.f32 %v1847, %v1851
        %v1853 = vmul.f32 %v1674, %v1852
        %vm1854 = vcmp.eq.f32.partialorder %v1674, inf
        %v1855 = vsel %vm1854, %v1674, %v1853
        %vm1856 = vcmp.eq.f32.partialorder %v1674, 0.0
        %v1857 = vand.u32 %v1674, 2147483648
        %v1858 = vsel %vm1856, %v1857, %v1855
        %v1859 = vrsqrt.pop %v1684
        %v1860 = vmul.f32 %v1859, %v1684
        %v1861 = vmul.f32 %v1860, %v1859
        %v1862 = vmul.f32 0.5, %v1861
        %v1863 = vsub.f32 1.5, %v1862
        %v1864 = vmul.f32 %v1859, %v1863
        %v1865 = vmul.f32 %v1684, %v1864
        %vm1866 = vcmp.eq.f32.partialorder %v1684, inf
        %v1867 = vsel %vm1866, %v1684, %v1865
        %vm1868 = vcmp.eq.f32.partialorder %v1684, 0.0
        %v1869 = vand.u32 %v1684, 2147483648
        %v1870 = vsel %vm1868, %v1869, %v1867
        %v1871 = vrsqrt.pop %v1694
        %v1872 = vmul.f32 %v1871, %v1694
        %v1873 = vmul.f32 %v1872, %v1871
        %v1874 = vmul.f32 0.5, %v1873
        %v1875 = vsub.f32 1.5, %v1874
        %v1876 = vmul.f32 %v1871, %v1875
        %v1877 = vmul.f32 %v1694, %v1876
        %vm1878 = vcmp.eq.f32.partialorder %v1694, inf
        %v1879 = vsel %vm1878, %v1694, %v1877
        %vm1880 = vcmp.eq.f32.partialorder %v1694, 0.0
        %v1881 = vand.u32 %v1694, 2147483648
        %v1882 = vsel %vm1880, %v1881, %v1879
        %v1883 = vrsqrt.pop %v1704
        %v1884 = vmul.f32 %v1883, %v1704
        %v1885 = vmul.f32 %v1884, %v1883
        %v1886 = vmul.f32 0.5, %v1885
        %v1887 = vsub.f32 1.5, %v1886
        %v1888 = vmul.f32 %v1883, %v1887
        %v1889 = vmul.f32 %v1704, %v1888
        %vm1890 = vcmp.eq.f32.partialorder %v1704, inf
        %v1891 = vsel %vm1890, %v1704, %v1889
        %vm1892 = vcmp.eq.f32.partialorder %v1704, 0.0
        %v1893 = vand.u32 %v1704, 2147483648
        %v1894 = vsel %vm1892, %v1893, %v1891
        %v1895 = vrsqrt.pop %v1714
        %v1896 = vmul.f32 %v1895, %v1714
        %v1897 = vmul.f32 %v1896, %v1895
        %v1898 = vmul.f32 0.5, %v1897
        %v1899 = vsub.f32 1.5, %v1898
        %v1900 = vmul.f32 %v1895, %v1899
        %v1901 = vmul.f32 %v1714, %v1900
        %vm1902 = vcmp.eq.f32.partialorder %v1714, inf
        %v1903 = vsel %vm1902, %v1714, %v1901
        %vm1904 = vcmp.eq.f32.partialorder %v1714, 0.0
        %v1905 = vand.u32 %v1714, 2147483648
        %v1906 = vsel %vm1904, %v1905, %v1903
        %v1907 = vmul.f32 %v1564, %v1726
        %v1908 = vmul.f32 %v1574, %v1738
        %v1909 = vmul.f32 %v1584, %v1750
        %v1910 = vmul.f32 %v1594, %v1762
        %v1911 = vmul.f32 %v1604, %v1774
        %v1912 = vmul.f32 %v1614, %v1786
        %v1913 = vmul.f32 %v1624, %v1798
        %v1914 = vmul.f32 %v1634, %v1810
        %v1915 = vmul.f32 %v1644, %v1822
        %v1916 = vmul.f32 %v1654, %v1834
        %v1917 = vmul.f32 %v1664, %v1846
        %v1918 = vmul.f32 %v1674, %v1858
        %v1919 = vmul.f32 %v1684, %v1870
        %v1920 = vmul.f32 %v1694, %v1882
        %v1921 = vmul.f32 %v1704, %v1894
        %v1922 = vmul.f32 %v1714, %v1906
        %v1923 = vmul.f32 %v1219, %v1907
        %v1924 = vmul.f32 %v1220, %v1908
        %v1925 = vmul.f32 %v1221, %v1909
        %v1926 = vmul.f32 %v1222, %v1910
        %v1927 = vmul.f32 %v1223, %v1911
        %v1928 = vmul.f32 %v1224, %v1912
        %v1929 = vmul.f32 %v1225, %v1913
        %v1930 = vmul.f32 %v1226, %v1914
        %v1931 = vmul.f32 %v1227, %v1915
        %v1932 = vmul.f32 %v1228, %v1916
        %v1933 = vmul.f32 %v1229, %v1917
        %v1934 = vmul.f32 %v1230, %v1918
        %v1935 = vmul.f32 %v1231, %v1919
        %v1936 = vmul.f32 %v1232, %v1920
        %v1937 = vmul.f32 %v1233, %v1921
        %v1938 = vmul.f32 %v1234, %v1922
        %v1939 = vmax.f32 %v1923, 0.0
        %v1940 = vmax.f32 %v1924, 0.0
        %v1941 = vmax.f32 %v1925, 0.0
        %v1942 = vmax.f32 %v1926, 0.0
        %v1943 = vmax.f32 %v1927, 0.0
        %v1944 = vmax.f32 %v1928, 0.0
        %v1945 = vmax.f32 %v1929, 0.0
        %v1946 = vmax.f32 %v1930, 0.0
        %v1947 = vmax.f32 %v1931, 0.0
        %v1948 = vmax.f32 %v1932, 0.0
        %v1949 = vmax.f32 %v1933, 0.0
        %v1950 = vmax.f32 %v1934, 0.0
        %v1951 = vmax.f32 %v1935, 0.0
        %v1952 = vmax.f32 %v1936, 0.0
        %v1953 = vmax.f32 %v1937, 0.0
        %v1954 = vmax.f32 %v1938, 0.0
        %v1963 = vrot.slane %v1939, 1
        %v1964 = vrot.slane %v1940, 1
        %v1965 = vsel %vm253, %v1963, %v1964
        %v1966 = vrot.slane %v1943, 1
        %v1967 = vrot.slane %v1944, 1
        %v1968 = vsel %vm253, %v1966, %v1967
        %v1969 = vrot.slane %v1947, 1
        %v1970 = vrot.slane %v1948, 1
        %v1971 = vsel %vm253, %v1969, %v1970
        %v1972 = vrot.slane %v1951, 1
        %v1973 = vrot.slane %v1952, 1
        %v1974 = vsel %vm253, %v1972, %v1973
        %v1983 = vmax.f32 %v1939, %v1965
        %v1984 = vmax.f32 %v1940, %v1964
        %v1985 = vmax.f32 %v1943, %v1968
        %v1986 = vmax.f32 %v1944, %v1967
        %v1987 = vmax.f32 %v1947, %v1971
        %v1988 = vmax.f32 %v1948, %v1970
        %v1989 = vmax.f32 %v1951, %v1974
        %v1990 = vmax.f32 %v1952, %v1973
        %v1991 = vmax.f32 %v1983, %v1941
        %v1992 = vmax.f32 %v1984, %v1942
        %v1993 = vmax.f32 %v1985, %v1945
        %v1994 = vmax.f32 %v1986, %v1946
        %v1995 = vmax.f32 %v1987, %v1949
        %v1996 = vmax.f32 %v1988, %v1950
        %v1997 = vmax.f32 %v1989, %v1953
        %v1998 = vmax.f32 %v1990, %v1954
        %v2007 = vrot.slane %v1941, 1
        %v2008 = vrot.slane %v1942, 1
        %v2009 = vsel %vm253, %v2007, %v2008
        %v2010 = vrot.slane %v1945, 1
        %v2011 = vrot.slane %v1946, 1
        %v2012 = vsel %vm253, %v2010, %v2011
        %v2013 = vrot.slane %v1949, 1
        %v2014 = vrot.slane %v1950, 1
        %v2015 = vsel %vm253, %v2013, %v2014
        %v2016 = vrot.slane %v1953, 1
        %v2017 = vrot.slane %v1954, 1
        %v2018 = vsel %vm253, %v2016, %v2017
        %v2027 = vmax.f32 %v1991, %v2009
        %v2028 = vmax.f32 %v1992, %v2008
        %v2029 = vmax.f32 %v1993, %v2012
        %v2030 = vmax.f32 %v1994, %v2011
        %v2031 = vmax.f32 %v1995, %v2015
        %v2032 = vmax.f32 %v1996, %v2014
        %v2033 = vmax.f32 %v1997, %v2018
        %v2034 = vmax.f32 %v1998, %v2017
        %v2039 = vrot.slane %v2027, 1
        %v2040 = vrot.slane %v2029, 1
        %v2041 = vrot.slane %v2031, 1
        %v2042 = vrot.slane %v2033, 1
        %v2047 = vrot.slane %v2027, 2
        %v2048 = vrot.slane %v2029, 2
        %v2049 = vrot.slane %v2031, 2
        %v2050 = vrot.slane %v2033, 2
        %v2055 = vrot.slane %v2027, 3
        %v2056 = vrot.slane %v2029, 3
        %v2057 = vrot.slane %v2031, 3
        %v2058 = vrot.slane %v2033, 3
        %v2067 = vrot.slane %v2028, 4
        %v2068 = vrot.slane %v2030, 4
        %v2069 = vrot.slane %v2032, 4
        %v2070 = vrot.slane %v2034, 4
        %v2075 = vrot.slane %v2028, 5
        %v2076 = vrot.slane %v2030, 5
        %v2077 = vrot.slane %v2032, 5
        %v2078 = vrot.slane %v2034, 5
        %v2083 = vrot.slane %v2028, 6
        %v2084 = vrot.slane %v2030, 6
        %v2085 = vrot.slane %v2032, 6
        %v2086 = vrot.slane %v2034, 6
        %v2091 = vrot.slane %v2028, 7
        %v2092 = vrot.slane %v2030, 7
        %v2093 = vrot.slane %v2032, 7
        %v2094 = vrot.slane %v2034, 7
        %vm2099 = vcmask 1040384
        %v2100 = vsel %vm2099, %v2027, %v2039
        %v2101 = vsel %vm2099, %v2029, %v2040
        %v2102 = vsel %vm2099, %v2031, %v2041
        %v2103 = vsel %vm2099, %v2033, %v2042
        %vm2104 = vcmask 1041408
        %v2105 = vsel %vm2104, %v2100, %v2047
        %v2106 = vsel %vm2104, %v2101, %v2048
        %v2107 = vsel %vm2104, %v2102, %v2049
        %v2108 = vsel %vm2104, %v2103, %v2050
        %vm2109 = vcmask 1042432
        %v2110 = vsel %vm2109, %v2105, %v2055
        %v2111 = vsel %vm2109, %v2106, %v2056
        %v2112 = vsel %vm2109, %v2107, %v2057
        %v2113 = vsel %vm2109, %v2108, %v2058
        %v2114 = vsel %vm328, %v2110, %v2067
        %v2115 = vsel %vm328, %v2111, %v2068
        %v2116 = vsel %vm328, %v2112, %v2069
        %v2117 = vsel %vm328, %v2113, %v2070
        %vm2118 = vcmask 1044480
        %v2119 = vsel %vm2118, %v2114, %v2075
        %v2120 = vsel %vm2118, %v2115, %v2076
        %v2121 = vsel %vm2118, %v2116, %v2077
        %v2122 = vsel %vm2118, %v2117, %v2078
        %v2123 = vsel %vm497, %v2119, %v2083
        %v2124 = vsel %vm497, %v2120, %v2084
        %v2125 = vsel %vm497, %v2121, %v2085
        %v2126 = vsel %vm497, %v2122, %v2086
        %v2127 = vsel %vm253, %v2123, %v2091
        %v2128 = vsel %vm253, %v2124, %v2092
        %v2129 = vsel %vm253, %v2125, %v2093
        %v2130 = vsel %vm253, %v2126, %v2094
        %2131 = vst [vmem:[%s187] sm:$0xff] %v2127
        %2132 = vst [vmem:[%s187 + $0x8] sm:$0xff] %v2128
        %2133 = vst [vmem:[%s187 + $0x10] sm:$0xff] %v2129
        %2134 = vst [vmem:[%s187 + $0x18] sm:$0xff] %v2130
        %s2135 = sand.u32 %s111, 1
        %s2136 = scalar_lea.sflag [#allocation3], %s2135
        %s2137 = sand.u32 %s111, 1
        %s2138 = smul.addr %s2137, 32
        %s2139 = scalar_lea.vmem [#allocation2], %s2138
        // Predicated region
        $region33: #{tpu_custom_call.1} parent=31 // pred_check
          %p2140 = pneg %p121
        $region34: #{tpu_custom_call.1} parent=31 // pred_check_branch
          %2142 = sbr.rel (%p2140) target = $region36
        $region35: #{tpu_custom_call.1} parent=31 // pred_region
          %s2143 = smul.u32 4, %s22
          %2145 = vsyncadd %s2136, 0
          %s2146 = smul.addr %s21, 8
          %s2147 = sadd.s32 %s2143, %s2146
          %s2148 = smul.addr %s2147, 8
          %s2149 = scalar_lea.hbm %s3, %s2148
          %s2150 = sshll.u32 %s2139, 4
          %s2151 = int_to_ptr.vmem [resolvable:$true] %s2150
          %s2152 = sshll.u32 %s2149, 4
          %s2153 = int_to_ptr.hbm [resolvable:$true] %s2152
          %2158 = dma.vmem_to_hbm [thread:$0]  %s2151, 512, %s2153, %s2136, 128, 128, 8
        $region36: #{tpu_custom_call.1} parent=31 // pred_fallthru
          _
      $region32: #{tpu_custom_call.1} parent=5 // pred_fallthru
        _
      %p2159 = scmp.le.s32.totalorder 2, %s12
      // Predicated region
      $region37: #{tpu_custom_call.1} parent=5 // pred_check
        %p2160 = pneg %p2159
      $region38: #{tpu_custom_call.1} parent=5 // pred_check_branch
        %2162 = sbr.rel (%p2160) target = $region40
      $region39: #{tpu_custom_call.1} parent=5 // pred_region
        %s2163 = ssub.s32 %s12, 2
        // Predicated region
        $region41: #{tpu_custom_call.1} parent=39 // pred_check
          %p2164 = pneg %p127
        $region42: #{tpu_custom_call.1} parent=39 // pred_check_branch
          %2166 = sbr.rel (%p2164) target = $region44
        $region43: #{tpu_custom_call.1} parent=39 // pred_region
          %s2167 = sand.u32 %s112, 1
          %s2168 = scalar_lea.sflag [#allocation3], %s2167
          %s2169 = sand.u32 %s112, 1
          %s2170 = smul.addr %s2169, 32
          %s2171 = scalar_lea.vmem [#allocation2], %s2170
          %2173 = dma.done %s2168, 512
        $region44: #{tpu_custom_call.1} parent=39 // pred_fallthru
          _
      $region40: #{tpu_custom_call.1} parent=5 // pred_fallthru
        _
    $region6: #{tpu_custom_call.1} parent=1 // loop_footer
      %s16 = sadd.s32 1, %s12
    $region7: #{tpu_custom_call.1} parent=1 // loop_footer_branch
      %11 = sbr.rel target = $region3
    $region8: #{tpu_custom_call.1} parent=1 // loop_exit
      _
    %2174 = vsyncpa [#allocation3], 1
    %s2175 = scalar_lea.sflag [#allocation3], 1
    %2176 = vsyncpa %s2175, 1

</llo_original>
